<compile_context>
chip_gen: v7x
topology: tpu7x:2x2x1
jax: 0.10.0
libtpu: 0.0.40
codegen_flags: <defaults>
</compile_context>

<pallas_src>
import jax
import jax.numpy as jnp
from jax import lax
from jax.experimental import pallas as pl
from jax.experimental.pallas import tpu as pltpu

EPS = 1e-5
BF16 = jnp.bfloat16


# --------------------------------------------------------------------------- #
# Kernel
# --------------------------------------------------------------------------- #
def _make_kernel(Ho, Wo, Cout, n_imgs, use_1x1conv, inkernel_conv1):
    """Builds the fused Residual kernel for static shapes / config."""
    M = n_imgs * Ho * Wo          # elements per channel (BN normalizer)
    inv_m = 1.0 / M

    def kernel(*refs):
        it = iter(refs)
        x1_ref = next(it)          # stride==1: (NH, W*Cin) bf16 ; else (3, NH, W*Cin) bf16
        b1w_ref = next(it)         # (3, W*Cin, WC) bf16 banded conv1 weights
        b2w_ref = next(it)         # (3, WC,    WC) bf16 banded conv2 weights
        sel_ref = next(it)         # (WC, Cout) bf16  (lane -> channel reduce)
        selT_ref = next(it)        # (Cout, WC) bf16  (channel -> lane broadcast)
        mt_ref = next(it)          # (NH, 1) bf16: 0 at image-top rows, else 1
        mb_ref = next(it)          # (NH, 1) bf16: 0 at image-bottom rows, else 1
        g1_ref = next(it); be1_ref = next(it)   # (1, Cout) f32
        g2_ref = next(it); be2_ref = next(it)   # (1, Cout) f32
        if use_1x1conv:
            w3b_ref = next(it)     # (W*Cin, WC) bf16
            b3_ref = next(it)      # (1, WC) f32
        out_ref = next(it)

        NH, WC = out_ref.shape
        sel_f = sel_ref[...].astype(jnp.float32)      # hoisted: used twice
        selT_f = selT_ref[...].astype(jnp.float32)
        mask_top = mt_ref[...]                        # (NH, 1) bf16
        mask_bot = mb_ref[...]

        def shift_rows(a):
            """Per-image vertical taps: up[r]=a[r-1] (0 at image top),
               dn[r]=a[r+1] (0 at image bottom). Masks are (NH,1) lane-broadcast."""
            z = jnp.zeros((1, a.shape[-1]), a.dtype)
            up = jnp.concatenate([z, a[:-1, :]], axis=0) * mask_top
            dn = jnp.concatenate([a[1:, :], z], axis=0) * mask_bot
            return up, dn

        def conv3(up, mid, dn, w_ref):
            # Three accumulating MXU matmuls against the banded weight blocks.
            return (jnp.dot(up, w_ref[0], preferred_element_type=jnp.float32)
                    + jnp.dot(mid, w_ref[1], preferred_element_type=jnp.float32)
                    + jnp.dot(dn, w_ref[2], preferred_element_type=jnp.float32))

        def batchnorm_relu(acc, g_ref, be_ref):
            # Per-channel training-mode batch stats, fused to one scale/shift.
            rsum = jnp.sum(acc, axis=0, keepdims=True)              # (1, WC)
            rsumsq = jnp.sum(acc * acc, axis=0, keepdims=True)      # (1, WC)
            stacked = jnp.concatenate([rsum, rsumsq], axis=0)       # (2, WC)
            per_ch = jnp.dot(stacked, sel_f,
                             preferred_element_type=jnp.float32)    # (2, Cout)
            mean = per_ch[0:1, :] * inv_m
            var = per_ch[1:2, :] * inv_m - mean * mean
            scale = g_ref[...] * lax.rsqrt(var + EPS)               # (1, Cout)
            shift = be_ref[...] - mean * scale
            ss = jnp.concatenate([scale, shift], axis=0)            # (2, Cout)
            ss_wc = jnp.dot(ss, selT_f,
                            preferred_element_type=jnp.float32)     # (2, WC)
            return jnp.maximum(acc * ss_wc[0:1, :] + ss_wc[1:2, :], 0.0)

        # ---- conv1 -----------------------------------------------------------
        if inkernel_conv1:
            x_mid = x1_ref[...]                     # (NH, W*Cin) bf16
            x_up, x_dn = shift_rows(x_mid)          # built in-kernel (stride=1)
        else:
            x_up = x1_ref[0]
            x_mid = x1_ref[1]
            x_dn = x1_ref[2]
        acc1 = conv3(x_up, x_mid, x_dn, b1w_ref)    # (NH, WC) f32
        y1 = batchnorm_relu(acc1, g1_ref, be1_ref)

        # ---- conv2 -----------------------------------------------------------
        y1c = y1.astype(BF16)                       # cast once
        y_up, y_dn = shift_rows(y1c)
        acc2 = conv3(y_up, y1c, y_dn, b2w_ref)      # (NH, WC) f32
        y2 = batchnorm_relu(acc2, g2_ref, be2_ref)

        # ---- shortcut (reuses the middle conv1 slab; no extra x stream) ------
        if use_1x1conv:
            sc = jnp.dot(x_mid, w3b_ref[...],
                         preferred_element_type=jnp.float32) + b3_ref[...]
        else:
            sc = x_mid.astype(jnp.float32)          # identity (bf16-rounded x)
        out_ref[...] = sc + y2

    return kernel


# --------------------------------------------------------------------------- #
# Hoisted parameter preprocessing (run once per parameter update)
# --------------------------------------------------------------------------- #
def _hshift_eye(rows, cols, s, off):
    i = jnp.arange(rows)[:, None]
    j = jnp.arange(cols)[None, :]
    return (i == j * s + off).astype(jnp.float32)


def _band_blocks(wk, in_w, out_w, s):
    """wk: (3, 3, Ci, Co) -> (3, in_w*Ci, out_w*Co).  One block per vertical
    tap; horizontal taps + zero padding folded into a banded matrix."""
    blocks = []
    for kh in range(3):
        blk = sum(jnp.kron(_hshift_eye(in_w, out_w, s, kw - 1), wk[kh, kw])
                  for kw in range(3))
        blocks.append(blk)
    return jnp.stack(blocks, axis=0)


def prepare_residual(params, *, N, H, W, use_1x1conv, stride=1):
    """Builds banded weights, BN helper matrices and boundary masks ONCE.
    b1 / b2 (conv biases) are intentionally unused: a per-channel constant
    before training-mode BN cancels exactly."""
    (w1, b1, g1, be1, w2, b2, g2, be2, w3, b3) = params
    Cin, Cout = w1.shape[2], w1.shape[3]
    Ho = (H - 1) // stride + 1
    Wo = (W - 1) // stride + 1
    NH, WC = N * Ho, Wo * Cout

    b1w = _band_blocks(w1, W, Wo, stride).astype(BF16)      # (3, W*Cin, WC)
    b2w = _band_blocks(w2, Wo, Wo, 1).astype(BF16)          # (3, WC,    WC)

    eye_c = jnp.eye(Cout, dtype=jnp.float32)
    sel = jnp.tile(eye_c, (Wo, 1)).astype(BF16)             # (WC, Cout)
    selT = jnp.tile(eye_c, (1, Wo)).astype(BF16)            # (Cout, WC)

    h_idx = jnp.arange(NH) % Ho
    mask_top = (h_idx != 0).astype(BF16).reshape(NH, 1)
    mask_bot = (h_idx != Ho - 1).astype(BF16).reshape(NH, 1)

    row = lambda v: v.reshape(1, -1).astype(jnp.float32)
    prepped = dict(
        b1w=b1w, b2w=b2w, sel=sel, selT=selT,
        mask_top=mask_top, mask_bot=mask_bot,
        g1=row(g1), be1=row(be1), g2=row(g2), be2=row(be2),
        use_1x1conv=use_1x1conv, stride=stride,
        N=N, H=H, W=W, Cin=Cin, Cout=Cout, Ho=Ho, Wo=Wo,
    )
    if use_1x1conv:
        # 1x1 shortcut (including its horizontal stride) folded into a banded
        # matrix applied to the middle conv1 slab -> no separate xs input.
        prepped["w3b"] = jnp.kron(_hshift_eye(W, Wo, stride, 0),
                                  w3).astype(BF16)           # (W*Cin, WC)
        prepped["b3t"] = jnp.tile(row(b3), (1, Wo))           # (1, WC)
    return prepped


# --------------------------------------------------------------------------- #
# Forward wrapper: layout plumbing + pallas_call
# --------------------------------------------------------------------------- #
def residual_forward(x_nchw, prepped):
    p = prepped
    N, H, W = p["N"], p["H"], p["W"]
    Cin, Cout, Ho, Wo = p["Cin"], p["Cout"], p["Ho"], p["Wo"]
    stride, use11 = p["stride"], p["use_1x1conv"]
    NH, WC = N * Ho, Wo * Cout

    x = jnp.transpose(x_nchw, (0, 2, 3, 1)).astype(jnp.float32)    # NHWC
    assert x.shape == (N, H, W, Cin)
    if not use11:
        assert stride == 1 and Cin == Cout  # identity shortcut reuses x slab

    if stride == 1:
        # Single lane-dense slab; vertical taps built in-kernel (1x input bytes).
        x1 = x.reshape(NH, W * Cin).astype(BF16)
    else:
        # TODO(synk): stride>1 still ships 3 strided slabs (3x input bytes);
        # could be cut to even/odd row planes with in-kernel shifts.
        xpv = jnp.pad(x, ((0, 0), (1, 1), (0, 0), (0, 0)))
        x1 = jnp.stack(
            [xpv[:, kh:kh + stride * (Ho - 1) + 1:stride, :, :]
             .reshape(NH, W * Cin) for kh in range(3)], axis=0).astype(BF16)

    inputs = [x1, p["b1w"], p["b2w"], p["sel"], p["selT"],
              p["mask_top"], p["mask_bot"],
              p["g1"], p["be1"], p["g2"], p["be2"]]
    if use11:
        inputs += [p["w3b"], p["b3t"]]

    kernel = _make_kernel(Ho, Wo, Cout, N, use11, stride == 1)

    # VMEM limit derived from actual buffer sizes (inputs + output + f32/bf16
    # temporaries), with 2x headroom, instead of a hardcoded constant.
    in_nbytes = sum(int(a.size) * a.dtype.itemsize for a in inputs)
    out_nbytes = NH * WC * 4
    temp_nbytes = 10 * NH * WC * 4 + 4 * NH * W * Cin * 2
    vmem_limit = max(8 * 1024 * 1024,
                     min(128 * 1024 * 1024,
                         2 * (in_nbytes + out_nbytes + temp_nbytes)))

    out = pl.pallas_call(
        kernel,
        out_shape=jax.ShapeDtypeStruct((NH, WC), jnp.float32),
        in_specs=[pl.BlockSpec(memory_space=pltpu.MemorySpace.VMEM)] * len(inputs),
        out_specs=pl.BlockSpec(memory_space=pltpu.MemorySpace.VMEM),
        compiler_params=pltpu.CompilerParams(vmem_limit_bytes=int(vmem_limit)),
    )(*inputs)

    out = out.reshape(N, Ho, Wo, Cout)
    return jnp.transpose(out, (0, 3, 1, 2))                        # back to NCHW


# --------------------------------------------------------------------------- #
# Parameters + pure-JAX reference
# --------------------------------------------------------------------------- #
def make_params(key, in_channels, out_channels, use_1x1conv):
    ks = jax.random.split(key, 10)
    w1 = 0.1 * jax.random.normal(ks[0], (3, 3, in_channels, out_channels), jnp.float32)
    b1 = 0.05 * jax.random.normal(ks[1], (out_channels,), jnp.float32)
    w2 = 0.1 * jax.random.normal(ks[2], (3, 3, out_channels, out_channels), jnp.float32)
    b2 = 0.05 * jax.random.normal(ks[3], (out_channels,), jnp.float32)
    g1 = 1.0 + 0.1 * jax.random.normal(ks[4], (out_channels,), jnp.float32)
    be1 = 0.1 * jax.random.normal(ks[5], (out_channels,), jnp.float32)
    g2 = 1.0 + 0.1 * jax.random.normal(ks[6], (out_channels,), jnp.float32)
    be2 = 0.1 * jax.random.normal(ks[7], (out_channels,), jnp.float32)
    if use_1x1conv:
        w3 = 0.1 * jax.random.normal(ks[8], (in_channels, out_channels), jnp.float32)
        b3 = 0.05 * jax.random.normal(ks[9], (out_channels,), jnp.float32)
    else:
        w3, b3 = None, None
    return (w1, b1, g1, be1, w2, b2, g2, be2, w3, b3)


def _reference(x_nchw, params, *, use_1x1conv, stride=1):
    """Pure-JAX f32 reference (training-mode BN, conv biases included)."""
    (w1, b1, g1, be1, w2, b2, g2, be2, w3, b3) = params
    x = jnp.transpose(x_nchw, (0, 2, 3, 1)).astype(jnp.float32)
    dn = ('NHWC', 'HWIO', 'NHWC')

    def conv3x3(a, w, b, s):
        return lax.conv_general_dilated(a, w, (s, s), [(1, 1), (1, 1)],
                                        dimension_numbers=dn) + b

    def bn(a, g, be):
        m = jnp.mean(a, axis=(0, 1, 2), keepdims=True)
        v = jnp.mean((a - m) ** 2, axis=(0, 1, 2), keepdims=True)
        return (a - m) * lax.rsqrt(v + EPS) * g + be

    y = jnp.maximum(bn(conv3x3(x, w1, b1, stride), g1, be1), 0.0)
    y = jnp.maximum(bn(conv3x3(y, w2, b2, 1), g2, be2), 0.0)
    if use_1x1conv:
        xs = x[:, ::stride, ::stride, :]
        short = jnp.einsum('nhwc,co->nhwo', xs, w3) + b3
    else:
        short = x
    out = short + y
    return jnp.transpose(out, (0, 3, 1, 2))


# --------------------------------------------------------------------------- #
# Demo / correctness check
# --------------------------------------------------------------------------- #
if __name__ == "__main__":
    key = jax.random.PRNGKey(0)
    configs = [
        # (N, Cin, Cout, H, W, use_1x1conv, stride)
        (2, 4, 8, 16, 16, True, 1),
        (2, 8, 8, 16, 16, False, 1),
        (2, 4, 8, 16, 16, True, 2),
    ]
    for cfg in configs:
        N, Cin, Cout, H, W, use11, s = cfg
        key, kx, kp = jax.random.split(key, 3)
        x = jax.random.normal(kx, (N, Cin, H, W), jnp.float32)
        params = make_params(kp, Cin, Cout, use11)

        # Hoisted: banded weights / helpers built once per parameter update.
        prepped = prepare_residual(params, N=N, H=H, W=W,
                                   use_1x1conv=use11, stride=s)

        out = jax.block_until_ready(residual_forward(x, prepped))
        ref = _reference(x, params, use_1x1conv=use11, stride=s)

        Ho = (H - 1) // s + 1
        Wo = (W - 1) // s + 1
        assert out.shape == (N, Cout, Ho, Wo)
        # Tolerance accounts for bf16 MXU operands in the kernel vs f32 reference.
        assert jnp.allclose(out, ref, rtol=5e-2, atol=5e-2), f"mismatch for {cfg}"

    print("KERNEL_OK")
</pallas_src>

<mosaic_0001>
module attributes {stable_mosaic.version = 11 : i64} {
  func.func @kernel(%arg0: memref<32x64xbf16, #tpu.memory_space<vmem>>, %arg1: memref<3x64x128xbf16, #tpu.memory_space<vmem>>, %arg2: memref<3x128x128xbf16, #tpu.memory_space<vmem>>, %arg3: memref<128x8xbf16, #tpu.memory_space<vmem>>, %arg4: memref<8x128xbf16, #tpu.memory_space<vmem>>, %arg5: memref<32x1xbf16, #tpu.memory_space<vmem>>, %arg6: memref<32x1xbf16, #tpu.memory_space<vmem>>, %arg7: memref<1x8xf32, #tpu.memory_space<vmem>>, %arg8: memref<1x8xf32, #tpu.memory_space<vmem>>, %arg9: memref<1x8xf32, #tpu.memory_space<vmem>>, %arg10: memref<1x8xf32, #tpu.memory_space<vmem>>, %arg11: memref<64x128xbf16, #tpu.memory_space<vmem>>, %arg12: memref<1x128xf32, #tpu.memory_space<vmem>>, %arg13: memref<32x128xf32, #tpu.memory_space<vmem>>) attributes {dimension_semantics = [], scalar_prefetch = 0 : i64, scratch_operands = 0 : i64, tpu.core_type = #tpu.core_type<tc>} {
    %c0 = arith.constant 0 : index
    %c0_0 = arith.constant 0 : index
    %0 = vector.load %arg3[%c0, %c0_0] : memref<128x8xbf16, #tpu.memory_space<vmem>>, vector<128x8xbf16>
    %1 = arith.extf %0 : vector<128x8xbf16> to vector<128x8xf32>
    %c0_1 = arith.constant 0 : index
    %c0_2 = arith.constant 0 : index
    %2 = vector.load %arg4[%c0_1, %c0_2] : memref<8x128xbf16, #tpu.memory_space<vmem>>, vector<8x128xbf16>
    %3 = arith.extf %2 : vector<8x128xbf16> to vector<8x128xf32>
    %c0_3 = arith.constant 0 : index
    %c0_4 = arith.constant 0 : index
    %4 = vector.load %arg5[%c0_3, %c0_4] : memref<32x1xbf16, #tpu.memory_space<vmem>>, vector<32x1xbf16>
    %c0_5 = arith.constant 0 : index
    %c0_6 = arith.constant 0 : index
    %5 = vector.load %arg6[%c0_5, %c0_6] : memref<32x1xbf16, #tpu.memory_space<vmem>>, vector<32x1xbf16>
    %c0_7 = arith.constant 0 : index
    %c0_8 = arith.constant 0 : index
    %6 = vector.load %arg0[%c0_7, %c0_8] : memref<32x64xbf16, #tpu.memory_space<vmem>>, vector<32x64xbf16>
    %cst = arith.constant 0.000000e+00 : bf16
    %7 = vector.broadcast %cst : bf16 to vector<1x64xbf16>
    %8 = vector.extract_strided_slice %6 {offsets = [0, 0], sizes = [31, 64], strides = [1, 1]} : vector<32x64xbf16> to vector<31x64xbf16>
    %9 = tpu.concatenate %7, %8 in 0 : vector<1x64xbf16>, vector<31x64xbf16> -> vector<32x64xbf16>
    %10 = vector.broadcast %4 : vector<32x1xbf16> to vector<32x64xbf16>
    %11 = arith.mulf %9, %10 : vector<32x64xbf16>
    %12 = vector.extract_strided_slice %6 {offsets = [1, 0], sizes = [31, 64], strides = [1, 1]} : vector<32x64xbf16> to vector<31x64xbf16>
    %13 = tpu.concatenate %12, %7 in 0 : vector<31x64xbf16>, vector<1x64xbf16> -> vector<32x64xbf16>
    %14 = vector.broadcast %5 : vector<32x1xbf16> to vector<32x64xbf16>
    %15 = arith.mulf %13, %14 : vector<32x64xbf16>
    %c0_9 = arith.constant 0 : index
    %c0_10 = arith.constant 0 : index
    %c0_11 = arith.constant 0 : index
    %16 = vector.load %arg1[%c0_9, %c0_10, %c0_11] : memref<3x64x128xbf16, #tpu.memory_space<vmem>>, vector<1x64x128xbf16>
    %17 = vector.shape_cast %16 : vector<1x64x128xbf16> to vector<64x128xbf16>
    %cst_12 = arith.constant dense<0.000000e+00> : vector<32x128xf32>
    %18 = tpu.matmul %11, %17, %cst_12 {dimension_numbers = #tpu.dot_dimension_numbers<[1], [0], [0], [1], [0, 0, 1, 1], [], []>} : vector<32x64xbf16>, vector<64x128xbf16>, vector<32x128xf32> -> vector<32x128xf32>
    %c1 = arith.constant 1 : index
    %c0_13 = arith.constant 0 : index
    %c0_14 = arith.constant 0 : index
    %19 = vector.load %arg1[%c1, %c0_13, %c0_14] : memref<3x64x128xbf16, #tpu.memory_space<vmem>>, vector<1x64x128xbf16>
    %20 = vector.shape_cast %19 : vector<1x64x128xbf16> to vector<64x128xbf16>
    %cst_15 = arith.constant dense<0.000000e+00> : vector<32x128xf32>
    %21 = tpu.matmul %6, %20, %cst_15 {dimension_numbers = #tpu.dot_dimension_numbers<[1], [0], [0], [1], [0, 0, 1, 1], [], []>} : vector<32x64xbf16>, vector<64x128xbf16>, vector<32x128xf32> -> vector<32x128xf32>
    %22 = arith.addf %18, %21 : vector<32x128xf32>
    %c2 = arith.constant 2 : index
    %c0_16 = arith.constant 0 : index
    %c0_17 = arith.constant 0 : index
    %23 = vector.load %arg1[%c2, %c0_16, %c0_17] : memref<3x64x128xbf16, #tpu.memory_space<vmem>>, vector<1x64x128xbf16>
    %24 = vector.shape_cast %23 : vector<1x64x128xbf16> to vector<64x128xbf16>
    %cst_18 = arith.constant dense<0.000000e+00> : vector<32x128xf32>
    %25 = tpu.matmul %15, %24, %cst_18 {dimension_numbers = #tpu.dot_dimension_numbers<[1], [0], [0], [1], [0, 0, 1, 1], [], []>} : vector<32x64xbf16>, vector<64x128xbf16>, vector<32x128xf32> -> vector<32x128xf32>
    %26 = arith.addf %22, %25 : vector<32x128xf32>
    %cst_19 = arith.constant dense<0.000000e+00> : vector<128xf32>
    %27 = vector.multi_reduction <add>, %26, %cst_19 [0] : vector<32x128xf32> to vector<128xf32>
    %28 = vector.shape_cast %27 : vector<128xf32> to vector<1x128xf32>
    %29 = arith.mulf %26, %26 : vector<32x128xf32>
    %cst_20 = arith.constant dense<0.000000e+00> : vector<128xf32>
    %30 = vector.multi_reduction <add>, %29, %cst_20 [0] : vector<32x128xf32> to vector<128xf32>
    %31 = vector.shape_cast %30 : vector<128xf32> to vector<1x128xf32>
    %32 = tpu.concatenate %28, %31 in 0 : vector<1x128xf32>, vector<1x128xf32> -> vector<2x128xf32>
    %cst_21 = arith.constant dense<0.000000e+00> : vector<2x8xf32>
    %33 = tpu.matmul %32, %1, %cst_21 {dimension_numbers = #tpu.dot_dimension_numbers<[1], [0], [0], [1], [0, 0, 1, 1], [], []>} : vector<2x128xf32>, vector<128x8xf32>, vector<2x8xf32> -> vector<2x8xf32>
    %34 = vector.extract_strided_slice %33 {offsets = [0, 0], sizes = [1, 8], strides = [1, 1]} : vector<2x8xf32> to vector<1x8xf32>
    %cst_22 = arith.constant 0.001953125 : f32
    %35 = vector.broadcast %cst_22 : f32 to vector<1x8xf32>
    %36 = arith.mulf %34, %35 : vector<1x8xf32>
    %37 = vector.extract_strided_slice %33 {offsets = [1, 0], sizes = [1, 8], strides = [1, 1]} : vector<2x8xf32> to vector<1x8xf32>
    %cst_23 = arith.constant 0.001953125 : f32
    %38 = vector.broadcast %cst_23 : f32 to vector<1x8xf32>
    %39 = arith.mulf %37, %38 : vector<1x8xf32>
    %40 = arith.mulf %36, %36 : vector<1x8xf32>
    %41 = arith.subf %39, %40 : vector<1x8xf32>
    %c0_24 = arith.constant 0 : index
    %c0_25 = arith.constant 0 : index
    %42 = vector.load %arg7[%c0_24, %c0_25] : memref<1x8xf32, #tpu.memory_space<vmem>>, vector<1x8xf32>
    %cst_26 = arith.constant 9.99999974E-6 : f32
    %43 = vector.broadcast %cst_26 : f32 to vector<1x8xf32>
    %44 = arith.addf %41, %43 : vector<1x8xf32>
    %45 = math.rsqrt %44 : vector<1x8xf32>
    %46 = arith.mulf %42, %45 : vector<1x8xf32>
    %c0_27 = arith.constant 0 : index
    %c0_28 = arith.constant 0 : index
    %47 = vector.load %arg8[%c0_27, %c0_28] : memref<1x8xf32, #tpu.memory_space<vmem>>, vector<1x8xf32>
    %48 = arith.mulf %36, %46 : vector<1x8xf32>
    %49 = arith.subf %47, %48 : vector<1x8xf32>
    %50 = tpu.concatenate %46, %49 in 0 : vector<1x8xf32>, vector<1x8xf32> -> vector<2x8xf32>
    %cst_29 = arith.constant dense<0.000000e+00> : vector<2x128xf32>
    %51 = tpu.matmul %50, %3, %cst_29 {dimension_numbers = #tpu.dot_dimension_numbers<[1], [0], [0], [1], [0, 0, 1, 1], [], []>} : vector<2x8xf32>, vector<8x128xf32>, vector<2x128xf32> -> vector<2x128xf32>
    %52 = vector.extract_strided_slice %51 {offsets = [0, 0], sizes = [1, 128], strides = [1, 1]} : vector<2x128xf32> to vector<1x128xf32>
    %53 = vector.broadcast %52 : vector<1x128xf32> to vector<32x128xf32>
    %54 = arith.mulf %26, %53 : vector<32x128xf32>
    %55 = vector.extract_strided_slice %51 {offsets = [1, 0], sizes = [1, 128], strides = [1, 1]} : vector<2x128xf32> to vector<1x128xf32>
    %56 = vector.broadcast %55 : vector<1x128xf32> to vector<32x128xf32>
    %57 = arith.addf %54, %56 : vector<32x128xf32>
    %cst_30 = arith.constant 0.000000e+00 : f32
    %58 = vector.broadcast %cst_30 : f32 to vector<32x128xf32>
    %59 = arith.maximumf %57, %58 : vector<32x128xf32>
    %60 = arith.truncf %59 : vector<32x128xf32> to vector<32x128xbf16>
    %cst_31 = arith.constant 0.000000e+00 : bf16
    %61 = vector.broadcast %cst_31 : bf16 to vector<1x128xbf16>
    %62 = vector.extract_strided_slice %60 {offsets = [0, 0], sizes = [31, 128], strides = [1, 1]} : vector<32x128xbf16> to vector<31x128xbf16>
    %63 = tpu.concatenate %61, %62 in 0 : vector<1x128xbf16>, vector<31x128xbf16> -> vector<32x128xbf16>
    %64 = vector.broadcast %4 : vector<32x1xbf16> to vector<32x128xbf16>
    %65 = arith.mulf %63, %64 : vector<32x128xbf16>
    %66 = vector.extract_strided_slice %60 {offsets = [1, 0], sizes = [31, 128], strides = [1, 1]} : vector<32x128xbf16> to vector<31x128xbf16>
    %67 = tpu.concatenate %66, %61 in 0 : vector<31x128xbf16>, vector<1x128xbf16> -> vector<32x128xbf16>
    %68 = vector.broadcast %5 : vector<32x1xbf16> to vector<32x128xbf16>
    %69 = arith.mulf %67, %68 : vector<32x128xbf16>
    %c0_32 = arith.constant 0 : index
    %c0_33 = arith.constant 0 : index
    %c0_34 = arith.constant 0 : index
    %70 = vector.load %arg2[%c0_32, %c0_33, %c0_34] : memref<3x128x128xbf16, #tpu.memory_space<vmem>>, vector<1x128x128xbf16>
    %71 = vector.shape_cast %70 : vector<1x128x128xbf16> to vector<128x128xbf16>
    %cst_35 = arith.constant dense<0.000000e+00> : vector<32x128xf32>
    %72 = tpu.matmul %65, %71, %cst_35 {dimension_numbers = #tpu.dot_dimension_numbers<[1], [0], [0], [1], [0, 0, 1, 1], [], []>} : vector<32x128xbf16>, vector<128x128xbf16>, vector<32x128xf32> -> vector<32x128xf32>
    %c1_36 = arith.constant 1 : index
    %c0_37 = arith.constant 0 : index
    %c0_38 = arith.constant 0 : index
    %73 = vector.load %arg2[%c1_36, %c0_37, %c0_38] : memref<3x128x128xbf16, #tpu.memory_space<vmem>>, vector<1x128x128xbf16>
    %74 = vector.shape_cast %73 : vector<1x128x128xbf16> to vector<128x128xbf16>
    %cst_39 = arith.constant dense<0.000000e+00> : vector<32x128xf32>
    %75 = tpu.matmul %60, %74, %cst_39 {dimension_numbers = #tpu.dot_dimension_numbers<[1], [0], [0], [1], [0, 0, 1, 1], [], []>} : vector<32x128xbf16>, vector<128x128xbf16>, vector<32x128xf32> -> vector<32x128xf32>
    %76 = arith.addf %72, %75 : vector<32x128xf32>
    %c2_40 = arith.constant 2 : index
    %c0_41 = arith.constant 0 : index
    %c0_42 = arith.constant 0 : index
    %77 = vector.load %arg2[%c2_40, %c0_41, %c0_42] : memref<3x128x128xbf16, #tpu.memory_space<vmem>>, vector<1x128x128xbf16>
    %78 = vector.shape_cast %77 : vector<1x128x128xbf16> to vector<128x128xbf16>
    %cst_43 = arith.constant dense<0.000000e+00> : vector<32x128xf32>
    %79 = tpu.matmul %69, %78, %cst_43 {dimension_numbers = #tpu.dot_dimension_numbers<[1], [0], [0], [1], [0, 0, 1, 1], [], []>} : vector<32x128xbf16>, vector<128x128xbf16>, vector<32x128xf32> -> vector<32x128xf32>
    %80 = arith.addf %76, %79 : vector<32x128xf32>
    %cst_44 = arith.constant dense<0.000000e+00> : vector<128xf32>
    %81 = vector.multi_reduction <add>, %80, %cst_44 [0] : vector<32x128xf32> to vector<128xf32>
    %82 = vector.shape_cast %81 : vector<128xf32> to vector<1x128xf32>
    %83 = arith.mulf %80, %80 : vector<32x128xf32>
    %cst_45 = arith.constant dense<0.000000e+00> : vector<128xf32>
    %84 = vector.multi_reduction <add>, %83, %cst_45 [0] : vector<32x128xf32> to vector<128xf32>
    %85 = vector.shape_cast %84 : vector<128xf32> to vector<1x128xf32>
    %86 = tpu.concatenate %82, %85 in 0 : vector<1x128xf32>, vector<1x128xf32> -> vector<2x128xf32>
    %cst_46 = arith.constant dense<0.000000e+00> : vector<2x8xf32>
    %87 = tpu.matmul %86, %1, %cst_46 {dimension_numbers = #tpu.dot_dimension_numbers<[1], [0], [0], [1], [0, 0, 1, 1], [], []>} : vector<2x128xf32>, vector<128x8xf32>, vector<2x8xf32> -> vector<2x8xf32>
    %88 = vector.extract_strided_slice %87 {offsets = [0, 0], sizes = [1, 8], strides = [1, 1]} : vector<2x8xf32> to vector<1x8xf32>
    %cst_47 = arith.constant 0.001953125 : f32
    %89 = vector.broadcast %cst_47 : f32 to vector<1x8xf32>
    %90 = arith.mulf %88, %89 : vector<1x8xf32>
    %91 = vector.extract_strided_slice %87 {offsets = [1, 0], sizes = [1, 8], strides = [1, 1]} : vector<2x8xf32> to vector<1x8xf32>
    %cst_48 = arith.constant 0.001953125 : f32
    %92 = vector.broadcast %cst_48 : f32 to vector<1x8xf32>
    %93 = arith.mulf %91, %92 : vector<1x8xf32>
    %94 = arith.mulf %90, %90 : vector<1x8xf32>
    %95 = arith.subf %93, %94 : vector<1x8xf32>
    %c0_49 = arith.constant 0 : index
    %c0_50 = arith.constant 0 : index
    %96 = vector.load %arg9[%c0_49, %c0_50] : memref<1x8xf32, #tpu.memory_space<vmem>>, vector<1x8xf32>
    %cst_51 = arith.constant 9.99999974E-6 : f32
    %97 = vector.broadcast %cst_51 : f32 to vector<1x8xf32>
    %98 = arith.addf %95, %97 : vector<1x8xf32>
    %99 = math.rsqrt %98 : vector<1x8xf32>
    %100 = arith.mulf %96, %99 : vector<1x8xf32>
    %c0_52 = arith.constant 0 : index
    %c0_53 = arith.constant 0 : index
    %101 = vector.load %arg10[%c0_52, %c0_53] : memref<1x8xf32, #tpu.memory_space<vmem>>, vector<1x8xf32>
    %102 = arith.mulf %90, %100 : vector<1x8xf32>
    %103 = arith.subf %101, %102 : vector<1x8xf32>
    %104 = tpu.concatenate %100, %103 in 0 : vector<1x8xf32>, vector<1x8xf32> -> vector<2x8xf32>
    %cst_54 = arith.constant dense<0.000000e+00> : vector<2x128xf32>
    %105 = tpu.matmul %104, %3, %cst_54 {dimension_numbers = #tpu.dot_dimension_numbers<[1], [0], [0], [1], [0, 0, 1, 1], [], []>} : vector<2x8xf32>, vector<8x128xf32>, vector<2x128xf32> -> vector<2x128xf32>
    %106 = vector.extract_strided_slice %105 {offsets = [0, 0], sizes = [1, 128], strides = [1, 1]} : vector<2x128xf32> to vector<1x128xf32>
    %107 = vector.broadcast %106 : vector<1x128xf32> to vector<32x128xf32>
    %108 = arith.mulf %80, %107 : vector<32x128xf32>
    %109 = vector.extract_strided_slice %105 {offsets = [1, 0], sizes = [1, 128], strides = [1, 1]} : vector<2x128xf32> to vector<1x128xf32>
    %110 = vector.broadcast %109 : vector<1x128xf32> to vector<32x128xf32>
    %111 = arith.addf %108, %110 : vector<32x128xf32>
    %cst_55 = arith.constant 0.000000e+00 : f32
    %112 = vector.broadcast %cst_55 : f32 to vector<32x128xf32>
    %113 = arith.maximumf %111, %112 : vector<32x128xf32>
    %c0_56 = arith.constant 0 : index
    %c0_57 = arith.constant 0 : index
    %114 = vector.load %arg11[%c0_56, %c0_57] : memref<64x128xbf16, #tpu.memory_space<vmem>>, vector<64x128xbf16>
    %cst_58 = arith.constant dense<0.000000e+00> : vector<32x128xf32>
    %115 = tpu.matmul %6, %114, %cst_58 {dimension_numbers = #tpu.dot_dimension_numbers<[1], [0], [0], [1], [0, 0, 1, 1], [], []>} : vector<32x64xbf16>, vector<64x128xbf16>, vector<32x128xf32> -> vector<32x128xf32>
    %c0_59 = arith.constant 0 : index
    %c0_60 = arith.constant 0 : index
    %116 = vector.load %arg12[%c0_59, %c0_60] : memref<1x128xf32, #tpu.memory_space<vmem>>, vector<1x128xf32>
    %117 = vector.broadcast %116 : vector<1x128xf32> to vector<32x128xf32>
    %118 = arith.addf %115, %117 : vector<32x128xf32>
    %119 = arith.addf %118, %113 : vector<32x128xf32>
    %c0_61 = arith.constant 0 : index
    %c0_62 = arith.constant 0 : index
    %120 = vector.load %arg13[%c0_61, %c0_62] : memref<32x128xf32, #tpu.memory_space<vmem>>, vector<32x128xf32>
    tpu.vector_store %arg13[%c0_61, %c0_62], %119 {strides = array<i32>} : memref<32x128xf32, #tpu.memory_space<vmem>>, vector<32x128xf32>,
    return
  }
}

</mosaic_0001>

<llo_original>
// kernel: tpu_custom_call.1
$region0: #{tpu_custom_call.1}
  #allocation0 [shape = 'u32[]', space=smem, size = 0x4, offset = 0x4, fixed_abs, tag = 'smem constant byte address 0x4 - core index']
  #allocation1 [shape = 'u32[144,128]{1,0:T(1,128)}', space=vmem, size = 0x12000, scoped, tag = 'internal scratch']
  %s0 = inlined_call_operand.hbm [shape: bf16[32,64], index: 0, kind: input, shape index: {}]
  %s1 = inlined_call_operand.vmem [shape: bf16[3,64,128], index: 1, kind: input, shape index: {}]
  %s2 = inlined_call_operand.hbm [shape: bf16[3,128,128], index: 2, kind: input, shape index: {}]
  %s3 = inlined_call_operand.vmem [shape: bf16[128,8], index: 3, kind: input, shape index: {}]
  %s4 = inlined_call_operand.hbm [shape: bf16[8,128], index: 4, kind: input, shape index: {}]
  %s5 = inlined_call_operand.vmem [shape: bf16[32,1], index: 5, kind: input, shape index: {}]
  %s6 = inlined_call_operand.vmem [shape: bf16[32,1], index: 6, kind: input, shape index: {}]
  %s7 = inlined_call_operand.hbm [shape: f32[1,8], index: 7, kind: input, shape index: {}]
  %s8 = inlined_call_operand.vmem [shape: f32[1,8], index: 8, kind: input, shape index: {}]
  %s9 = inlined_call_operand.vmem [shape: f32[1,8], index: 9, kind: input, shape index: {}]
  %s10 = inlined_call_operand.vmem [shape: f32[1,8], index: 10, kind: input, shape index: {}]
  %s11 = inlined_call_operand.vmem [shape: bf16[64,128], index: 11, kind: input, shape index: {}]
  %s12 = inlined_call_operand.vmem [shape: f32[1,128], index: 12, kind: input, shape index: {}]
  %s13 = inlined_call_operand.hbm [shape: f32[32,128], index: 13, kind: output, shape index: {}]
  %s14 = sld [smem:[#allocation0]]
  $region78: #{tpu_custom_call.1} parent=0
    _
  %s16 = ssub.s32 1, %s14
  %s17 = scalar_select 0, %s16, %s14
  $region1: #{tpu_custom_call.1} parent=0
    #allocation2 [shape = 'u8[8192]{0}', space=vmem, size = 0x2000, scoped, tag = 'input window, operand 0, single buffered']
    #allocation3 [shape = 's32[1]{0}', space=sflag, size = 0x4, scoped, tag = 'scoped memory for tpu_custom_call.1']
    #allocation4 [shape = 's32[1]{0}', space=sflag, size = 0x4, scoped, tag = 'scoped memory for tpu_custom_call.1']
    #allocation5 [shape = 'u8[98304]{0}', space=vmem, size = 0x18000, scoped, tag = 'input window, operand 2, single buffered']
    #allocation6 [shape = 's32[1]{0}', space=sflag, size = 0x4, scoped, tag = 'scoped memory for tpu_custom_call.1']
    #allocation7 [shape = 'u8[2048]{0}', space=vmem, size = 0x800, scoped, tag = 'input window, operand 4, single buffered']
    #allocation8 [shape = 'u8[512]{0}', space=vmem, size = 0x400, scoped, tag = 'input window, operand 7, single buffered']
    #allocation9 [shape = 's32[1]{0}', space=sflag, size = 0x4, scoped, tag = 'scoped memory for tpu_custom_call.1']
    #allocation10 [shape = 'u8[16384]{0}', space=vmem, size = 0x4000, scoped, tag = 'output window, operand 0, single buffered']
    %18 = vsyncpa [#allocation3], 0
    %19 = vsyncpa [#allocation6], 0
    %20 = vsyncpa [#allocation9], 0
    %21 = vsyncpa [#allocation4], 0
    // Predicated region
    $region2: #{tpu_custom_call.1} parent=1 // pred_check
      _
    $region3: #{tpu_custom_call.1} parent=1 // pred_check_branch
      %23 = sbr.rel (0) target = $region5
    $region4: #{tpu_custom_call.1} parent=1 // pred_region
      %s25 = ssub.s32 256, 256
      %26 = vsyncadd [#allocation3], %s25
      %s27 = sshll.u32 [#allocation2], 4
      %s28 = int_to_ptr.vmem [resolvable:$true] %s27
      %33 = dma.hbm_to_vmem [thread:$0]  %s0, 256, %s28, [#allocation3], 64, 64, 4
    $region5: #{tpu_custom_call.1} parent=1 // pred_fallthru
      _
    // Predicated region
    $region6: #{tpu_custom_call.1} parent=1 // pred_check
      _
    $region7: #{tpu_custom_call.1} parent=1 // pred_check_branch
      %35 = sbr.rel (0) target = $region9
    $region8: #{tpu_custom_call.1} parent=1 // pred_region
      _
    $region9: #{tpu_custom_call.1} parent=1 // pred_fallthru
      _
    // Predicated region
    $region10: #{tpu_custom_call.1} parent=1 // pred_check
      _
    $region11: #{tpu_custom_call.1} parent=1 // pred_check_branch
      %37 = sbr.rel (0) target = $region13
    $region12: #{tpu_custom_call.1} parent=1 // pred_region
      %s39 = ssub.s32 3072, 3072
      %40 = vsyncadd [#allocation6], %s39
      %s41 = sshll.u32 [#allocation5], 4
      %s42 = int_to_ptr.vmem [resolvable:$true] %s41
      %47 = dma.hbm_to_vmem [thread:$0]  %s2, 3072, %s42, [#allocation6], 64, 64, 4
    $region13: #{tpu_custom_call.1} parent=1 // pred_fallthru
      _
    // Predicated region
    $region14: #{tpu_custom_call.1} parent=1 // pred_check
      _
    $region15: #{tpu_custom_call.1} parent=1 // pred_check_branch
      %49 = sbr.rel (0) target = $region17
    $region16: #{tpu_custom_call.1} parent=1 // pred_region
      _
    $region17: #{tpu_custom_call.1} parent=1 // pred_fallthru
      _
    // Predicated region
    $region18: #{tpu_custom_call.1} parent=1 // pred_check
      _
    $region19: #{tpu_custom_call.1} parent=1 // pred_check_branch
      %51 = sbr.rel (0) target = $region21
    $region20: #{tpu_custom_call.1} parent=1 // pred_region
      %s53 = ssub.s32 64, 64
      %54 = vsyncadd [#allocation6], %s53
      %s56 = sshll.u32 [#allocation7], 4
      %s57 = int_to_ptr.vmem [resolvable:$true] %s56
      %59 = dma.hbm_to_vmem [thread:$0]  %s4, 64, %s57, [#allocation6]
    $region21: #{tpu_custom_call.1} parent=1 // pred_fallthru
      _
    // Predicated region
    $region22: #{tpu_custom_call.1} parent=1 // pred_check
      _
    $region23: #{tpu_custom_call.1} parent=1 // pred_check_branch
      %61 = sbr.rel (0) target = $region25
    $region24: #{tpu_custom_call.1} parent=1 // pred_region
      _
    $region25: #{tpu_custom_call.1} parent=1 // pred_fallthru
      _
    // Predicated region
    $region26: #{tpu_custom_call.1} parent=1 // pred_check
      _
    $region27: #{tpu_custom_call.1} parent=1 // pred_check_branch
      %63 = sbr.rel (0) target = $region29
    $region28: #{tpu_custom_call.1} parent=1 // pred_region
      _
    $region29: #{tpu_custom_call.1} parent=1 // pred_fallthru
      _
    // Predicated region
    $region30: #{tpu_custom_call.1} parent=1 // pred_check
      _
    $region31: #{tpu_custom_call.1} parent=1 // pred_check_branch
      %65 = sbr.rel (0) target = $region33
    $region32: #{tpu_custom_call.1} parent=1 // pred_region
      %s67 = ssub.s32 16, 16
      %68 = vsyncadd [#allocation9], %s67
      %s70 = sshll.u32 [#allocation8], 4
      %s71 = int_to_ptr.vmem [resolvable:$true] %s70
      %73 = dma.hbm_to_vmem [thread:$0]  %s7, 16, %s71, [#allocation9]
    $region33: #{tpu_custom_call.1} parent=1 // pred_fallthru
      _
    // Predicated region
    $region34: #{tpu_custom_call.1} parent=1 // pred_check
      _
    $region35: #{tpu_custom_call.1} parent=1 // pred_check_branch
      %75 = sbr.rel (0) target = $region37
    $region36: #{tpu_custom_call.1} parent=1 // pred_region
      _
    $region37: #{tpu_custom_call.1} parent=1 // pred_fallthru
      _
    // Predicated region
    $region38: #{tpu_custom_call.1} parent=1 // pred_check
      _
    $region39: #{tpu_custom_call.1} parent=1 // pred_check_branch
      %77 = sbr.rel (0) target = $region41
    $region40: #{tpu_custom_call.1} parent=1 // pred_region
      _
    $region41: #{tpu_custom_call.1} parent=1 // pred_fallthru
      _
    // Predicated region
    $region42: #{tpu_custom_call.1} parent=1 // pred_check
      _
    $region43: #{tpu_custom_call.1} parent=1 // pred_check_branch
      %79 = sbr.rel (0) target = $region45
    $region44: #{tpu_custom_call.1} parent=1 // pred_region
      _
    $region45: #{tpu_custom_call.1} parent=1 // pred_fallthru
      _
    // Predicated region
    $region46: #{tpu_custom_call.1} parent=1 // pred_check
      _
    $region47: #{tpu_custom_call.1} parent=1 // pred_check_branch
      %81 = sbr.rel (0) target = $region49
    $region48: #{tpu_custom_call.1} parent=1 // pred_region
      _
    $region49: #{tpu_custom_call.1} parent=1 // pred_fallthru
      _
    // Predicated region
    $region50: #{tpu_custom_call.1} parent=1 // pred_check
      _
    $region51: #{tpu_custom_call.1} parent=1 // pred_check_branch
      %83 = sbr.rel (0) target = $region53
    $region52: #{tpu_custom_call.1} parent=1 // pred_region
      _
    $region53: #{tpu_custom_call.1} parent=1 // pred_fallthru
      _
    // Predicated region
    $region54: #{tpu_custom_call.1} parent=1 // pred_check
      _
    $region55: #{tpu_custom_call.1} parent=1 // pred_check_branch
      %85 = sbr.rel (0) target = $region57
    $region56: #{tpu_custom_call.1} parent=1 // pred_region
      %86 = dma.done [#allocation3], 256
    $region57: #{tpu_custom_call.1} parent=1 // pred_fallthru
      _
    // Predicated region
    $region58: #{tpu_custom_call.1} parent=1 // pred_check
      _
    $region59: #{tpu_custom_call.1} parent=1 // pred_check_branch
      %88 = sbr.rel (0) target = $region61
    $region60: #{tpu_custom_call.1} parent=1 // pred_region
      %89 = dma.done [#allocation6], 3072
    $region61: #{tpu_custom_call.1} parent=1 // pred_fallthru
      _
    // Predicated region
    $region62: #{tpu_custom_call.1} parent=1 // pred_check
      _
    $region63: #{tpu_custom_call.1} parent=1 // pred_check_branch
      %91 = sbr.rel (0) target = $region65
    $region64: #{tpu_custom_call.1} parent=1 // pred_region
      %92 = dma.done [#allocation6], 64
    $region65: #{tpu_custom_call.1} parent=1 // pred_fallthru
      _
    // Predicated region
    $region66: #{tpu_custom_call.1} parent=1 // pred_check
      _
    $region67: #{tpu_custom_call.1} parent=1 // pred_check_branch
      %94 = sbr.rel (0) target = $region69
    $region68: #{tpu_custom_call.1} parent=1 // pred_region
      %95 = dma.done [#allocation9], 16
    $region69: #{tpu_custom_call.1} parent=1 // pred_fallthru
      _
    %v97 = vld [vmem:[%s3] sm:$0xf]
    %v98 = vld [vmem:[%s3 + $0x4] sm:$0xf]
    %v99 = vld [vmem:[%s3 + $0x8] sm:$0xf]
    %v100 = vld [vmem:[%s3 + $0xc] sm:$0xf]
    %v101 = vld [vmem:[%s3 + $0x10] sm:$0xf]
    %v102 = vld [vmem:[%s3 + $0x14] sm:$0xf]
    %v103 = vld [vmem:[%s3 + $0x18] sm:$0xf]
    %v104 = vld [vmem:[%s3 + $0x1c] sm:$0xf]
    %v105 = vld [vmem:[%s3 + $0x20] sm:$0xf]
    %v106 = vld [vmem:[%s3 + $0x24] sm:$0xf]
    %v107 = vld [vmem:[%s3 + $0x28] sm:$0xf]
    %v108 = vld [vmem:[%s3 + $0x2c] sm:$0xf]
    %v109 = vld [vmem:[%s3 + $0x30] sm:$0xf]
    %v110 = vld [vmem:[%s3 + $0x34] sm:$0xf]
    %v111 = vld [vmem:[%s3 + $0x38] sm:$0xf]
    %v112 = vld [vmem:[%s3 + $0x3c] sm:$0xf]
    %v113 = vunpack.c.l.bf16 %v97
    %v114 = vunpack.c.l.bf16 %v98
    %v115 = vunpack.c.l.bf16 %v99
    %v116 = vunpack.c.l.bf16 %v100
    %v117 = vunpack.c.l.bf16 %v101
    %v118 = vunpack.c.l.bf16 %v102
    %v119 = vunpack.c.l.bf16 %v103
    %v120 = vunpack.c.l.bf16 %v104
    %v121 = vunpack.c.l.bf16 %v105
    %v122 = vunpack.c.l.bf16 %v106
    %v123 = vunpack.c.l.bf16 %v107
    %v124 = vunpack.c.l.bf16 %v108
    %v125 = vunpack.c.l.bf16 %v109
    %v126 = vunpack.c.l.bf16 %v110
    %v127 = vunpack.c.l.bf16 %v111
    %v128 = vunpack.c.l.bf16 %v112
    %v129 = vld [vmem:[#allocation7] sm:$0xf]
    %v130 = vunpack.c.l.bf16 %v129
    %v131 = vld [vmem:[%s5] sm:$0xf]
    %v132 = vld [vmem:[%s5 + $0x4] sm:$0xf]
    %v133 = vld [vmem:[%s5 + $0x8] sm:$0xf]
    %v134 = vld [vmem:[%s5 + $0xc] sm:$0xf]
    %v135 = vld [vmem:[%s6] sm:$0xf]
    %v136 = vld [vmem:[%s6 + $0x4] sm:$0xf]
    %v137 = vld [vmem:[%s6 + $0x8] sm:$0xf]
    %v138 = vld [vmem:[%s6 + $0xc] sm:$0xf]
    %v139 = vld [vmem:[#allocation2] sm:$0xf]
    %v140 = vld [vmem:[#allocation2 + $0x4] sm:$0xf]
    %v141 = vld [vmem:[#allocation2 + $0x8] sm:$0xf]
    %v142 = vld [vmem:[#allocation2 + $0xc] sm:$0xf]
    %v147 = vunpack.c.l.b16 %v139
    %v148 = vunpack.c.l.b16 %v140
    %v149 = vunpack.c.l.b16 %v141
    %v150 = vunpack.c.l.b16 %v142
    %v151 = vpack.c.b16 %v148, %v147
    %v152 = vpack.c.b16 %v150, %v149
    %vm153 = vsmask.f32 256
    %v155 = vshrl.u32 %v151, 16
    %v157 = vrot.slane %v155, 7
    %v158 = vshll.u32 %v151, 16
    %v160 = vor.u32 %v157, %v158
    %v162 = vshrl.u32 %v152, 16
    %v164 = vrot.slane %v162, 7
    %v165 = vshll.u32 %v152, 16
    %v167 = vor.u32 %v164, %v165
    %v168 = vsel %vm153, %v157, %v167
    %vm171 = vcmask 1040384
    %vm172 = vmand %vm171, %vm153
    %v173 = vsel %vm172, 0, %v160
    %175 = vset.pattern.permute.xlu0 0
    %176 = vperm.xlu0 %175, %v131
    %v177 = vpop.permute.xlu0 %176
    %v180 = vunpack.c.l.s4 839922192
    %v181 = vunpack.c.0.s8 %v180
    %v182 = vlaneseq
    %v183 = vshrl.u32 %v182, 7
    %v184 = vsub.s32 %v181, %v183
    %v185 = vrot.slane %v177, %v184
    %187 = vset.pattern.permute.xlu0 0
    %188 = vperm.xlu0 %187, %v132
    %v189 = vpop.permute.xlu0 %188
    %v192 = vunpack.c.l.s4 839922192
    %v193 = vunpack.c.0.s8 %v192
    %v194 = vlaneseq
    %v195 = vshrl.u32 %v194, 7
    %v196 = vsub.s32 %v193, %v195
    %v197 = vrot.slane %v189, %v196
    %199 = vset.pattern.permute.xlu0 0
    %200 = vperm.xlu0 %199, %v133
    %v201 = vpop.permute.xlu0 %200
    %v204 = vunpack.c.l.s4 839922192
    %v205 = vunpack.c.0.s8 %v204
    %v206 = vlaneseq
    %v207 = vshrl.u32 %v206, 7
    %v208 = vsub.s32 %v205, %v207
    %v209 = vrot.slane %v201, %v208
    %211 = vset.pattern.permute.xlu0 0
    %212 = vperm.xlu0 %211, %v134
    %v213 = vpop.permute.xlu0 %212
    %v216 = vunpack.c.l.s4 839922192
    %v217 = vunpack.c.0.s8 %v216
    %v218 = vlaneseq
    %v219 = vshrl.u32 %v218, 7
    %v220 = vsub.s32 %v217, %v219
    %v221 = vrot.slane %v213, %v220
    %v226 = vunpack.c.l.b16 %v185
    %v227 = vunpack.c.l.b16 %v197
    %v228 = vunpack.c.l.b16 %v209
    %v229 = vunpack.c.l.b16 %v221
    %v230 = vpack.c.b16 %v227, %v226
    %v231 = vpack.c.b16 %v229, %v228
    %v234 = vmul.bf16 %v173, %v230
    %v235 = vmul.bf16 %v168, %v231
    %vm236 = vsmask.f32 7424
    %v237 = vrot.slane %v158, 1
    %v238 = vor.u32 %v155, %v237
    %v239 = vrot.slane %v165, 1
    %v240 = vsel %vm236, %v238, %v239
    %v241 = vor.u32 %v162, %v239
    %vm244 = vcmask 1047552
    %vm245 = vmand %vm244, %vm236
    %v246 = vsel %vm245, %v241, 0
    %248 = vset.pattern.permute.xlu0 0
    %249 = vperm.xlu0 %248, %v135
    %v250 = vpop.permute.xlu0 %249
    %v253 = vunpack.c.l.s4 839922192
    %v254 = vunpack.c.0.s8 %v253
    %v255 = vlaneseq
    %v256 = vshrl.u32 %v255, 7
    %v257 = vsub.s32 %v254, %v256
    %v258 = vrot.slane %v250, %v257
    %260 = vset.pattern.permute.xlu0 0
    %261 = vperm.xlu0 %260, %v136
    %v262 = vpop.permute.xlu0 %261
    %v265 = vunpack.c.l.s4 839922192
    %v266 = vunpack.c.0.s8 %v265
    %v267 = vlaneseq
    %v268 = vshrl.u32 %v267, 7
    %v269 = vsub.s32 %v266, %v268
    %v270 = vrot.slane %v262, %v269
    %272 = vset.pattern.permute.xlu0 0
    %273 = vperm.xlu0 %272, %v137
    %v274 = vpop.permute.xlu0 %273
    %v277 = vunpack.c.l.s4 839922192
    %v278 = vunpack.c.0.s8 %v277
    %v279 = vlaneseq
    %v280 = vshrl.u32 %v279, 7
    %v281 = vsub.s32 %v278, %v280
    %v282 = vrot.slane %v274, %v281
    %284 = vset.pattern.permute.xlu0 0
    %285 = vperm.xlu0 %284, %v138
    %v286 = vpop.permute.xlu0 %285
    %v289 = vunpack.c.l.s4 839922192
    %v290 = vunpack.c.0.s8 %v289
    %v291 = vlaneseq
    %v292 = vshrl.u32 %v291, 7
    %v293 = vsub.s32 %v290, %v292
    %v294 = vrot.slane %v286, %v293
    %v299 = vunpack.c.l.b16 %v258
    %v300 = vunpack.c.l.b16 %v270
    %v301 = vunpack.c.l.b16 %v282
    %v302 = vunpack.c.l.b16 %v294
    %v303 = vpack.c.b16 %v300, %v299
    %v304 = vpack.c.b16 %v302, %v301
    %v307 = vmul.bf16 %v240, %v303
    %v308 = vmul.bf16 %v246, %v304
    %v309 = vld [vmem:[%s1] sm:$0xf]
    %v310 = vld [vmem:[%s1 + $0x4] sm:$0xf]
    %v311 = vld [vmem:[%s1 + $0x8] sm:$0xf]
    %v312 = vld [vmem:[%s1 + $0xc] sm:$0xf]
    %v313 = vld [vmem:[%s1 + $0x10] sm:$0xf]
    %v314 = vld [vmem:[%s1 + $0x14] sm:$0xf]
    %v315 = vld [vmem:[%s1 + $0x18] sm:$0xf]
    %v316 = vld [vmem:[%s1 + $0x1c] sm:$0xf]
    %s317 = scalar_lea.vmem %s1, 32
    %v318 = vld [vmem:[%s317] sm:$0xf]
    %v319 = vld [vmem:[%s317 + $0x4] sm:$0xf]
    %v320 = vld [vmem:[%s317 + $0x8] sm:$0xf]
    %v321 = vld [vmem:[%s317 + $0xc] sm:$0xf]
    %v322 = vld [vmem:[%s317 + $0x10] sm:$0xf]
    %v323 = vld [vmem:[%s317 + $0x14] sm:$0xf]
    %v324 = vld [vmem:[%s317 + $0x18] sm:$0xf]
    %v325 = vld [vmem:[%s317 + $0x1c] sm:$0xf]
    %v334 = vunpack.c.l.b16 %v318
    %v335 = vunpack.c.l.b16 %v319
    %v336 = vunpack.c.l.b16 %v320
    %v337 = vunpack.c.l.b16 %v321
    %v338 = vunpack.c.l.b16 %v322
    %v339 = vunpack.c.l.b16 %v323
    %v340 = vunpack.c.l.b16 %v324
    %v341 = vunpack.c.l.b16 %v325
    %v342 = vpack.c.b16 %v335, %v334
    %v343 = vpack.c.b16 %v337, %v336
    %v344 = vpack.c.b16 %v339, %v338
    %v345 = vpack.c.b16 %v341, %v340
    %vm350 = vcmask 523264
    %v351 = vsel %vm350, %v151, 0
    %v353 = vsel %vm350, %v152, 0
    %355 = vmatprep.subr.bf16.mxu0 0
    %356 = vmatpush1.bf16.msra.mxu0 %v342
    %357 = vmatprep.subr.bf16.mxu0 0
    %358 = vmatpush1.bf16.msra.mxu0 %v343
    %359 = vmatprep.subr.bf16.mxu0 0
    %360 = vmatpush1.bf16.msra.mxu0 %v344
    %361 = vmatprep.subr.bf16.mxu0 0
    %362 = vmatpush1.bf16.msra.mxu0 %v345
    %363 = vmatprep.subr.bf16.mxu0 0
    %364 = vmatpush1.bf16.msra.mxu0 0
    %365 = vmatprep.subr.bf16.mxu0 0
    %366 = vmatpush1.bf16.msra.mxu0 0
    %367 = vmatprep.subr.bf16.mxu0 0
    %368 = vmatpush1.bf16.msra.mxu0 0
    %369 = vmatprep.subr.bf16.mxu0 0
    %370 = vmatpush1.bf16.msra.mxu0 0
    %371 = vmatprep.subr.bf16.mxu0 0
    %372 = vmatpush1.bf16.msra.mxu0 0
    %373 = vmatprep.subr.bf16.mxu0 0
    %374 = vmatpush1.bf16.msra.mxu0 0
    %375 = vmatprep.subr.bf16.mxu0 0
    %376 = vmatpush1.bf16.msra.mxu0 0
    %377 = vmatprep.subr.bf16.mxu0 0
    %378 = vmatpush1.bf16.msra.mxu0 0
    %379 = vmatprep.subr.bf16.mxu0 0
    %380 = vmatpush1.bf16.msra.mxu0 0
    %381 = vmatprep.subr.bf16.mxu0 0
    %382 = vmatpush1.bf16.msra.mxu0 0
    %383 = vmatprep.subr.bf16.mxu0 0
    %384 = vmatpush1.bf16.msra.mxu0 0
    %385 = vmatprep.subr.bf16.mxu0 0
    %386 = vmatpush1.bf16.msra.mxu0 0
    %387 = vmatprep.mubr.bf16.mxu0 0
    %388 = vmatmul.mubr.bf16.gmra.mrb[0].mxu0 %v351
    %v389 = vpop.f32.mrb[0].mxu0
    %v390 = vadd.f32 0.0, %v389
    %v391 = vpop.f32.mrb[0].mxu0
    %v392 = vpop.f32.mrb[0].mxu0
    %v393 = vadd.f32 0.0, %v392
    %v394 = vpop.f32.mrb[0].mxu0
    %395 = vmatprep.mubr.bf16.mxu0 0
    %396 = vmatmul.mubr.bf16.gmra.mrb[0].mxu0 %v353
    %v397 = vpop.f32.mrb[0].mxu0
    %v398 = vadd.f32 0.0, %v397
    %v399 = vpop.f32.mrb[0].mxu0
    %v400 = vpop.f32.mrb[0].mxu0
    %v401 = vadd.f32 0.0, %v400
    %v402 = vpop.f32.mrb[0].mxu0
    %403 = vdwg.mxu0
    %v412 = vunpack.c.l.b16 %v309
    %v413 = vunpack.c.l.b16 %v310
    %v414 = vunpack.c.l.b16 %v311
    %v415 = vunpack.c.l.b16 %v312
    %v416 = vunpack.c.l.b16 %v313
    %v417 = vunpack.c.l.b16 %v314
    %v418 = vunpack.c.l.b16 %v315
    %v419 = vunpack.c.l.b16 %v316
    %v420 = vpack.c.b16 %v413, %v412
    %v421 = vpack.c.b16 %v415, %v414
    %v422 = vpack.c.b16 %v417, %v416
    %v423 = vpack.c.b16 %v419, %v418
    %v429 = vsel %vm350, %v234, 0
    %v432 = vsel %vm350, %v235, 0
    %434 = vmatprep.subr.bf16.mxu0 0
    %435 = vmatpush1.bf16.msra.mxu0 %v420
    %436 = vmatprep.subr.bf16.mxu0 0
    %437 = vmatpush1.bf16.msra.mxu0 %v421
    %438 = vmatprep.subr.bf16.mxu0 0
    %439 = vmatpush1.bf16.msra.mxu0 %v422
    %440 = vmatprep.subr.bf16.mxu0 0
    %441 = vmatpush1.bf16.msra.mxu0 %v423
    %442 = vmatprep.subr.bf16.mxu0 0
    %443 = vmatpush1.bf16.msra.mxu0 0
    %444 = vmatprep.subr.bf16.mxu0 0
    %445 = vmatpush1.bf16.msra.mxu0 0
    %446 = vmatprep.subr.bf16.mxu0 0
    %447 = vmatpush1.bf16.msra.mxu0 0
    %448 = vmatprep.subr.bf16.mxu0 0
    %449 = vmatpush1.bf16.msra.mxu0 0
    %450 = vmatprep.subr.bf16.mxu0 0
    %451 = vmatpush1.bf16.msra.mxu0 0
    %452 = vmatprep.subr.bf16.mxu0 0
    %453 = vmatpush1.bf16.msra.mxu0 0
    %454 = vmatprep.subr.bf16.mxu0 0
    %455 = vmatpush1.bf16.msra.mxu0 0
    %456 = vmatprep.subr.bf16.mxu0 0
    %457 = vmatpush1.bf16.msra.mxu0 0
    %458 = vmatprep.subr.bf16.mxu0 0
    %459 = vmatpush1.bf16.msra.mxu0 0
    %460 = vmatprep.subr.bf16.mxu0 0
    %461 = vmatpush1.bf16.msra.mxu0 0
    %462 = vmatprep.subr.bf16.mxu0 0
    %463 = vmatpush1.bf16.msra.mxu0 0
    %464 = vmatprep.subr.bf16.mxu0 0
    %465 = vmatpush1.bf16.msra.mxu0 0
    %466 = vmatprep.mubr.bf16.mxu0 0
    %467 = vmatmul.mubr.bf16.gmra.mrb[0].mxu0 %v429
    %v468 = vpop.f32.mrb[0].mxu0
    %v469 = vadd.f32 %v390, %v468
    %v470 = vpop.f32.mrb[0].mxu0
    %v471 = vpop.f32.mrb[0].mxu0
    %v472 = vadd.f32 %v393, %v471
    %v473 = vpop.f32.mrb[0].mxu0
    %474 = vmatprep.mubr.bf16.mxu0 0
    %475 = vmatmul.mubr.bf16.gmra.mrb[0].mxu0 %v432
    %v476 = vpop.f32.mrb[0].mxu0
    %v477 = vadd.f32 %v398, %v476
    %v478 = vpop.f32.mrb[0].mxu0
    %v479 = vpop.f32.mrb[0].mxu0
    %v480 = vadd.f32 %v401, %v479
    %v481 = vpop.f32.mrb[0].mxu0
    %482 = vdwg.mxu0
    %s483 = scalar_lea.vmem %s1, 64
    %v484 = vld [vmem:[%s483] sm:$0xf]
    %v485 = vld [vmem:[%s483 + $0x4] sm:$0xf]
    %v486 = vld [vmem:[%s483 + $0x8] sm:$0xf]
    %v487 = vld [vmem:[%s483 + $0xc] sm:$0xf]
    %v488 = vld [vmem:[%s483 + $0x10] sm:$0xf]
    %v489 = vld [vmem:[%s483 + $0x14] sm:$0xf]
    %v490 = vld [vmem:[%s483 + $0x18] sm:$0xf]
    %v491 = vld [vmem:[%s483 + $0x1c] sm:$0xf]
    %v500 = vunpack.c.l.b16 %v484
    %v501 = vunpack.c.l.b16 %v485
    %v502 = vunpack.c.l.b16 %v486
    %v503 = vunpack.c.l.b16 %v487
    %v504 = vunpack.c.l.b16 %v488
    %v505 = vunpack.c.l.b16 %v489
    %v506 = vunpack.c.l.b16 %v490
    %v507 = vunpack.c.l.b16 %v491
    %v508 = vpack.c.b16 %v501, %v500
    %v509 = vpack.c.b16 %v503, %v502
    %v510 = vpack.c.b16 %v505, %v504
    %v511 = vpack.c.b16 %v507, %v506
    %v517 = vsel %vm350, %v307, 0
    %v520 = vsel %vm350, %v308, 0
    %522 = vmatprep.subr.bf16.mxu0 0
    %523 = vmatpush1.bf16.msra.mxu0 %v508
    %524 = vmatprep.subr.bf16.mxu0 0
    %525 = vmatpush1.bf16.msra.mxu0 %v509
    %526 = vmatprep.subr.bf16.mxu0 0
    %527 = vmatpush1.bf16.msra.mxu0 %v510
    %528 = vmatprep.subr.bf16.mxu0 0
    %529 = vmatpush1.bf16.msra.mxu0 %v511
    %530 = vmatprep.subr.bf16.mxu0 0
    %531 = vmatpush1.bf16.msra.mxu0 0
    %532 = vmatprep.subr.bf16.mxu0 0
    %533 = vmatpush1.bf16.msra.mxu0 0
    %534 = vmatprep.subr.bf16.mxu0 0
    %535 = vmatpush1.bf16.msra.mxu0 0
    %536 = vmatprep.subr.bf16.mxu0 0
    %537 = vmatpush1.bf16.msra.mxu0 0
    %538 = vmatprep.subr.bf16.mxu0 0
    %539 = vmatpush1.bf16.msra.mxu0 0
    %540 = vmatprep.subr.bf16.mxu0 0
    %541 = vmatpush1.bf16.msra.mxu0 0
    %542 = vmatprep.subr.bf16.mxu0 0
    %543 = vmatpush1.bf16.msra.mxu0 0
    %544 = vmatprep.subr.bf16.mxu0 0
    %545 = vmatpush1.bf16.msra.mxu0 0
    %546 = vmatprep.subr.bf16.mxu0 0
    %547 = vmatpush1.bf16.msra.mxu0 0
    %548 = vmatprep.subr.bf16.mxu0 0
    %549 = vmatpush1.bf16.msra.mxu0 0
    %550 = vmatprep.subr.bf16.mxu0 0
    %551 = vmatpush1.bf16.msra.mxu0 0
    %552 = vmatprep.subr.bf16.mxu0 0
    %553 = vmatpush1.bf16.msra.mxu0 0
    %554 = vmatprep.mubr.bf16.mxu0 0
    %555 = vmatmul.mubr.bf16.gmra.mrb[0].mxu0 %v517
    %v556 = vpop.f32.mrb[0].mxu0
    %v557 = vadd.f32 0.0, %v556
    %v558 = vpop.f32.mrb[0].mxu0
    %v559 = vpop.f32.mrb[0].mxu0
    %v560 = vadd.f32 0.0, %v559
    %v561 = vpop.f32.mrb[0].mxu0
    %562 = vmatprep.mubr.bf16.mxu0 0
    %563 = vmatmul.mubr.bf16.gmra.mrb[0].mxu0 %v520
    %v564 = vpop.f32.mrb[0].mxu0
    %v565 = vadd.f32 0.0, %v564
    %v566 = vpop.f32.mrb[0].mxu0
    %v567 = vpop.f32.mrb[0].mxu0
    %v568 = vadd.f32 0.0, %v567
    %v569 = vpop.f32.mrb[0].mxu0
    %570 = vdwg.mxu0
    %v571 = vadd.f32 %v469, %v557
    %v572 = vadd.f32 %v472, %v560
    %v573 = vadd.f32 %v477, %v565
    %v574 = vadd.f32 %v480, %v568
    %v575 = vadd.f32 %v571, %v572
    %v576 = vadd.f32 %v575, %v573
    %v577 = vadd.f32 %v576, %v574
    %v578 = vrot.slane %v577, 4
    %v579 = vadd.f32 %v577, %v578
    %v580 = vrot.slane %v579, 2
    %v581 = vadd.f32 %v579, %v580
    %v582 = vrot.slane %v581, 1
    %v583 = vadd.f32 %v581, %v582
    %v584 = vmul.f32 %v571, %v571
    %v585 = vmul.f32 %v572, %v572
    %v586 = vmul.f32 %v573, %v573
    %v587 = vmul.f32 %v574, %v574
    %v588 = vadd.f32 %v584, %v585
    %v589 = vadd.f32 %v588, %v586
    %v590 = vadd.f32 %v589, %v587
    %v591 = vrot.slane %v590, 4
    %v592 = vadd.f32 %v590, %v591
    %v593 = vrot.slane %v592, 2
    %v594 = vadd.f32 %v592, %v593
    %v595 = vrot.slane %v594, 1
    %v596 = vadd.f32 %v594, %v595
    %vm597 = vcmask 1040384
    %v598 = vsel %vm597, %v583, %v596
    %599 = vmatprep.subr.mxu0 0.0
    %600 = vmatpush1.msra.mxu0 %v113
    %601 = vmatprep.subr.mxu0 0.0
    %602 = vmatpush1.msra.mxu0 %v114
    %603 = vmatprep.subr.mxu0 0.0
    %604 = vmatpush1.msra.mxu0 %v115
    %605 = vmatprep.subr.mxu0 0.0
    %606 = vmatpush1.msra.mxu0 %v116
    %607 = vmatprep.subr.mxu0 0.0
    %608 = vmatpush1.msra.mxu0 %v117
    %609 = vmatprep.subr.mxu0 0.0
    %610 = vmatpush1.msra.mxu0 %v118
    %611 = vmatprep.subr.mxu0 0.0
    %612 = vmatpush1.msra.mxu0 %v119
    %613 = vmatprep.subr.mxu0 0.0
    %614 = vmatpush1.msra.mxu0 %v120
    %615 = vmatprep.subr.mxu0 0.0
    %616 = vmatpush1.msra.mxu0 %v121
    %617 = vmatprep.subr.mxu0 0.0
    %618 = vmatpush1.msra.mxu0 %v122
    %619 = vmatprep.subr.mxu0 0.0
    %620 = vmatpush1.msra.mxu0 %v123
    %621 = vmatprep.subr.mxu0 0.0
    %622 = vmatpush1.msra.mxu0 %v124
    %623 = vmatprep.subr.mxu0 0.0
    %624 = vmatpush1.msra.mxu0 %v125
    %625 = vmatprep.subr.mxu0 0.0
    %626 = vmatpush1.msra.mxu0 %v126
    %627 = vmatprep.subr.mxu0 0.0
    %628 = vmatpush1.msra.mxu0 %v127
    %629 = vmatprep.subr.mxu0 0.0
    %630 = vmatpush1.msra.mxu0 %v128
    %631 = vmatprep.subr.mxu0 0.0
    %632 = vmatpush1.msra.mxu0 0.0
    %633 = vmatprep.subr.mxu0 0.0
    %634 = vmatpush1.msra.mxu0 0.0
    %635 = vmatprep.subr.mxu0 0.0
    %636 = vmatpush1.msra.mxu0 0.0
    %637 = vmatprep.subr.mxu0 0.0
    %638 = vmatpush1.msra.mxu0 0.0
    %639 = vmatprep.subr.mxu0 0.0
    %640 = vmatpush1.msra.mxu0 0.0
    %641 = vmatprep.subr.mxu0 0.0
    %642 = vmatpush1.msra.mxu0 0.0
    %643 = vmatprep.subr.mxu0 0.0
    %644 = vmatpush1.msra.mxu0 0.0
    %645 = vmatprep.subr.mxu0 0.0
    %646 = vmatpush1.msra.mxu0 0.0
    %647 = vmatprep.subr.mxu0 0.0
    %648 = vmatpush1.msra.mxu0 0.0
    %649 = vmatprep.subr.mxu0 0.0
    %650 = vmatpush1.msra.mxu0 0.0
    %651 = vmatprep.subr.mxu0 0.0
    %652 = vmatpush1.msra.mxu0 0.0
    %653 = vmatprep.subr.mxu0 0.0
    %654 = vmatpush1.msra.mxu0 0.0
    %655 = vmatprep.subr.mxu0 0.0
    %656 = vmatpush1.msra.mxu0 0.0
    %657 = vmatprep.subr.mxu0 0.0
    %658 = vmatpush1.msra.mxu0 0.0
    %659 = vmatprep.subr.mxu0 0.0
    %660 = vmatpush1.msra.mxu0 0.0
    %661 = vmatprep.subr.mxu0 0.0
    %662 = vmatpush1.msra.mxu0 0.0
    %663 = vmatprep.mubr.f32.mxu0 0.0
    %664 = vmatmul.mubr.f32.gmra.mrb[0].mxu0 %v598
    %v665 = vpop.f32.mrb[0].mxu0
    %v666 = vadd.f32 0.0, %v665
    %v667 = vpop.f32.mrb[0].mxu0
    %668 = vdwg.mxu0
    %v669 = vmul.f32 %v666, 0.001953125
    %v670 = vmul.f32 %v669, %v669
    %v672 = vrot.slane %v670, 7
    %v674 = vsub.f32 %v669, %v672
    %v675 = vld [vmem:[#allocation8] sm:$0x1]
    %v676 = vadd.f32 %v674, 1e-05
    %v677 = vrsqrt.pop %v676
    %v680 = vunpack.c.l.s4 1966171168
    %v681 = vunpack.c.0.s8 %v680
    %v682 = vlaneseq
    %v683 = vshrl.u32 %v682, 7
    %v684 = vsub.s32 %v681, %v683
    %v685 = vrot.slane %v677, %v684
    %v686 = vcombine.high %v685, %v685
    %v688 = vunpack.c.l.s4 1966171168
    %v689 = vunpack.c.0.s8 %v688
    %v690 = vlaneseq
    %v691 = vshrl.u32 %v690, 7
    %v692 = vsub.s32 %v689, %v691
    %v693 = vrot.slane %v686, %v692
    %v695 = vmul.f32 %v675, %v693
    %v696 = vld [vmem:[%s8] sm:$0x1]
    %v697 = vmul.f32 %v669, %v695
    %v698 = vsub.f32 %v696, %v697
    %v700 = vlaneseq
    %v701 = vshrl.u32 %v700, 7
    %v702 = vsub.s32 0, %v701
    %v703 = vrot.slane %v698, %v702
    %v705 = vsel %vm597, %v695, %v703
    %vm706 = vcmask 64512
    %v708 = vsel %vm706, %v705, 0
    %710 = vmatprep.subr.mxu0 0.0
    %711 = vmatpush1.msra.mxu0 %v130
    %712 = vmatprep.subr.mxu0 0.0
    %713 = vmatpush1.msra.mxu0 0.0
    %714 = vmatprep.subr.mxu0 0.0
    %715 = vmatpush1.msra.mxu0 0.0
    %716 = vmatprep.subr.mxu0 0.0
    %717 = vmatpush1.msra.mxu0 0.0
    %718 = vmatprep.subr.mxu0 0.0
    %719 = vmatpush1.msra.mxu0 0.0
    %720 = vmatprep.subr.mxu0 0.0
    %721 = vmatpush1.msra.mxu0 0.0
    %722 = vmatprep.subr.mxu0 0.0
    %723 = vmatpush1.msra.mxu0 0.0
    %724 = vmatprep.subr.mxu0 0.0
    %725 = vmatpush1.msra.mxu0 0.0
    %726 = vmatprep.subr.mxu0 0.0
    %727 = vmatpush1.msra.mxu0 0.0
    %728 = vmatprep.subr.mxu0 0.0
    %729 = vmatpush1.msra.mxu0 0.0
    %730 = vmatprep.subr.mxu0 0.0
    %731 = vmatpush1.msra.mxu0 0.0
    %732 = vmatprep.subr.mxu0 0.0
    %733 = vmatpush1.msra.mxu0 0.0
    %734 = vmatprep.subr.mxu0 0.0
    %735 = vmatpush1.msra.mxu0 0.0
    %736 = vmatprep.subr.mxu0 0.0
    %737 = vmatpush1.msra.mxu0 0.0
    %738 = vmatprep.subr.mxu0 0.0
    %739 = vmatpush1.msra.mxu0 0.0
    %740 = vmatprep.subr.mxu0 0.0
    %741 = vmatpush1.msra.mxu0 0.0
    %742 = vmatprep.subr.mxu0 0.0
    %743 = vmatpush1.msra.mxu0 0.0
    %744 = vmatprep.subr.mxu0 0.0
    %745 = vmatpush1.msra.mxu0 0.0
    %746 = vmatprep.subr.mxu0 0.0
    %747 = vmatpush1.msra.mxu0 0.0
    %748 = vmatprep.subr.mxu0 0.0
    %749 = vmatpush1.msra.mxu0 0.0
    %750 = vmatprep.subr.mxu0 0.0
    %751 = vmatpush1.msra.mxu0 0.0
    %752 = vmatprep.subr.mxu0 0.0
    %753 = vmatpush1.msra.mxu0 0.0
    %754 = vmatprep.subr.mxu0 0.0
    %755 = vmatpush1.msra.mxu0 0.0
    %756 = vmatprep.subr.mxu0 0.0
    %757 = vmatpush1.msra.mxu0 0.0
    %758 = vmatprep.subr.mxu0 0.0
    %759 = vmatpush1.msra.mxu0 0.0
    %760 = vmatprep.subr.mxu0 0.0
    %761 = vmatpush1.msra.mxu0 0.0
    %762 = vmatprep.subr.mxu0 0.0
    %763 = vmatpush1.msra.mxu0 0.0
    %764 = vmatprep.subr.mxu0 0.0
    %765 = vmatpush1.msra.mxu0 0.0
    %766 = vmatprep.subr.mxu0 0.0
    %767 = vmatpush1.msra.mxu0 0.0
    %768 = vmatprep.subr.mxu0 0.0
    %769 = vmatpush1.msra.mxu0 0.0
    %770 = vmatprep.subr.mxu0 0.0
    %771 = vmatpush1.msra.mxu0 0.0
    %772 = vmatprep.subr.mxu0 0.0
    %773 = vmatpush1.msra.mxu0 0.0
    %774 = vmatprep.mubr.f32.mxu0 0.0
    %775 = vmatmul.mubr.f32.gmra.mrb[0].mxu0 %v708
    %v776 = vpop.f32.mrb[0].mxu0
    %v777 = vadd.f32 0.0, %v776
    %v778 = vpop.f32.mrb[0].mxu0
    %779 = vdwg.mxu0
    %v780 = vlaneseq
    %v781 = vshrl.u32 %v780, 7
    %v782 = vsub.s32 0, %v781
    %v783 = vrot.slane %v777, %v782
    %v784 = vmul.f32 %v571, %v783
    %v785 = vmul.f32 %v572, %v783
    %v786 = vmul.f32 %v573, %v783
    %v787 = vmul.f32 %v574, %v783
    %v788 = vlaneseq
    %v789 = vshrl.u32 %v788, 7
    %v790 = vsub.s32 1, %v789
    %v791 = vrot.slane %v777, %v790
    %v792 = vadd.f32 %v784, %v791
    %v793 = vadd.f32 %v785, %v791
    %v794 = vadd.f32 %v786, %v791
    %v795 = vadd.f32 %v787, %v791
    %v796 = vmax.f32 %v792, 0.0
    %v797 = vmax.f32 %v793, 0.0
    %v798 = vmax.f32 %v794, 0.0
    %v799 = vmax.f32 %v795, 0.0
    %v800 = vpack.c.bf16 %v797, %v796
    %v801 = vpack.c.bf16 %v799, %v798
    %v803 = vshrl.u32 %v800, 16
    %v805 = vrot.slane %v803, 7
    %v806 = vshll.u32 %v800, 16
    %v808 = vor.u32 %v805, %v806
    %v810 = vshrl.u32 %v801, 16
    %v812 = vrot.slane %v810, 7
    %v813 = vshll.u32 %v801, 16
    %v815 = vor.u32 %v812, %v813
    %v816 = vsel %vm153, %v805, %v815
    %v819 = vsel %vm172, 0, %v808
    %v820 = vmul.bf16 %v819, %v230
    %v821 = vmul.bf16 %v816, %v231
    %v822 = vrot.slane %v806, 1
    %v823 = vor.u32 %v803, %v822
    %v824 = vrot.slane %v813, 1
    %v825 = vsel %vm236, %v823, %v824
    %v826 = vor.u32 %v810, %v824
    %v829 = vsel %vm245, %v826, 0
    %v830 = vmul.bf16 %v825, %v303
    %v831 = vmul.bf16 %v829, %v304
    %v832 = vld [vmem:[#allocation5] sm:$0xf]
    %v833 = vld [vmem:[#allocation5 + $0x4] sm:$0xf]
    %v834 = vld [vmem:[#allocation5 + $0x8] sm:$0xf]
    %v835 = vld [vmem:[#allocation5 + $0xc] sm:$0xf]
    %v836 = vld [vmem:[#allocation5 + $0x10] sm:$0xf]
    %v837 = vld [vmem:[#allocation5 + $0x14] sm:$0xf]
    %v838 = vld [vmem:[#allocation5 + $0x18] sm:$0xf]
    %v839 = vld [vmem:[#allocation5 + $0x1c] sm:$0xf]
    %v840 = vld [vmem:[#allocation5 + $0x20] sm:$0xf]
    %v841 = vld [vmem:[#allocation5 + $0x24] sm:$0xf]
    %v842 = vld [vmem:[#allocation5 + $0x28] sm:$0xf]
    %v843 = vld [vmem:[#allocation5 + $0x2c] sm:$0xf]
    %v844 = vld [vmem:[#allocation5 + $0x30] sm:$0xf]
    %v845 = vld [vmem:[#allocation5 + $0x34] sm:$0xf]
    %v846 = vld [vmem:[#allocation5 + $0x38] sm:$0xf]
    %v847 = vld [vmem:[#allocation5 + $0x3c] sm:$0xf]
    %s848 = scalar_lea.vmem [#allocation5], 64
    %v849 = vld [vmem:[%s848] sm:$0xf]
    %v850 = vld [vmem:[%s848 + $0x4] sm:$0xf]
    %v851 = vld [vmem:[%s848 + $0x8] sm:$0xf]
    %v852 = vld [vmem:[%s848 + $0xc] sm:$0xf]
    %v853 = vld [vmem:[%s848 + $0x10] sm:$0xf]
    %v854 = vld [vmem:[%s848 + $0x14] sm:$0xf]
    %v855 = vld [vmem:[%s848 + $0x18] sm:$0xf]
    %v856 = vld [vmem:[%s848 + $0x1c] sm:$0xf]
    %v857 = vld [vmem:[%s848 + $0x20] sm:$0xf]
    %v858 = vld [vmem:[%s848 + $0x24] sm:$0xf]
    %v859 = vld [vmem:[%s848 + $0x28] sm:$0xf]
    %v860 = vld [vmem:[%s848 + $0x2c] sm:$0xf]
    %v861 = vld [vmem:[%s848 + $0x30] sm:$0xf]
    %v862 = vld [vmem:[%s848 + $0x34] sm:$0xf]
    %v863 = vld [vmem:[%s848 + $0x38] sm:$0xf]
    %v864 = vld [vmem:[%s848 + $0x3c] sm:$0xf]
    %v881 = vunpack.c.l.b16 %v849
    %v882 = vunpack.c.l.b16 %v850
    %v883 = vunpack.c.l.b16 %v851
    %v884 = vunpack.c.l.b16 %v852
    %v885 = vunpack.c.l.b16 %v853
    %v886 = vunpack.c.l.b16 %v854
    %v887 = vunpack.c.l.b16 %v855
    %v888 = vunpack.c.l.b16 %v856
    %v889 = vunpack.c.l.b16 %v857
    %v890 = vunpack.c.l.b16 %v858
    %v891 = vunpack.c.l.b16 %v859
    %v892 = vunpack.c.l.b16 %v860
    %v893 = vunpack.c.l.b16 %v861
    %v894 = vunpack.c.l.b16 %v862
    %v895 = vunpack.c.l.b16 %v863
    %v896 = vunpack.c.l.b16 %v864
    %v897 = vpack.c.b16 %v882, %v881
    %v898 = vpack.c.b16 %v884, %v883
    %v899 = vpack.c.b16 %v886, %v885
    %v900 = vpack.c.b16 %v888, %v887
    %v901 = vpack.c.b16 %v890, %v889
    %v902 = vpack.c.b16 %v892, %v891
    %v903 = vpack.c.b16 %v894, %v893
    %v904 = vpack.c.b16 %v896, %v895
    %913 = vmatprep.subr.bf16.mxu0 0
    %914 = vmatpush1.bf16.msra.mxu0 %v897
    %915 = vmatprep.subr.bf16.mxu0 0
    %916 = vmatpush1.bf16.msra.mxu0 %v898
    %917 = vmatprep.subr.bf16.mxu0 0
    %918 = vmatpush1.bf16.msra.mxu0 %v899
    %919 = vmatprep.subr.bf16.mxu0 0
    %920 = vmatpush1.bf16.msra.mxu0 %v900
    %921 = vmatprep.subr.bf16.mxu0 0
    %922 = vmatpush1.bf16.msra.mxu0 %v901
    %923 = vmatprep.subr.bf16.mxu0 0
    %924 = vmatpush1.bf16.msra.mxu0 %v902
    %925 = vmatprep.subr.bf16.mxu0 0
    %926 = vmatpush1.bf16.msra.mxu0 %v903
    %927 = vmatprep.subr.bf16.mxu0 0
    %928 = vmatpush1.bf16.msra.mxu0 %v904
    %929 = vmatprep.subr.bf16.mxu0 0
    %930 = vmatpush1.bf16.msra.mxu0 0
    %931 = vmatprep.subr.bf16.mxu0 0
    %932 = vmatpush1.bf16.msra.mxu0 0
    %933 = vmatprep.subr.bf16.mxu0 0
    %934 = vmatpush1.bf16.msra.mxu0 0
    %935 = vmatprep.subr.bf16.mxu0 0
    %936 = vmatpush1.bf16.msra.mxu0 0
    %937 = vmatprep.subr.bf16.mxu0 0
    %938 = vmatpush1.bf16.msra.mxu0 0
    %939 = vmatprep.subr.bf16.mxu0 0
    %940 = vmatpush1.bf16.msra.mxu0 0
    %941 = vmatprep.subr.bf16.mxu0 0
    %942 = vmatpush1.bf16.msra.mxu0 0
    %943 = vmatprep.subr.bf16.mxu0 0
    %944 = vmatpush1.bf16.msra.mxu0 0
    %945 = vmatprep.mubr.bf16.mxu0 0
    %946 = vmatmul.mubr.bf16.gmra.mrb[0].mxu0 %v800
    %v947 = vpop.f32.mrb[0].mxu0
    %v948 = vadd.f32 0.0, %v947
    %v949 = vpop.f32.mrb[0].mxu0
    %v950 = vpop.f32.mrb[0].mxu0
    %v951 = vadd.f32 0.0, %v950
    %v952 = vpop.f32.mrb[0].mxu0
    %953 = vmatprep.mubr.bf16.mxu0 0
    %954 = vmatmul.mubr.bf16.gmra.mrb[0].mxu0 %v801
    %v955 = vpop.f32.mrb[0].mxu0
    %v956 = vadd.f32 0.0, %v955
    %v957 = vpop.f32.mrb[0].mxu0
    %v958 = vpop.f32.mrb[0].mxu0
    %v959 = vadd.f32 0.0, %v958
    %v960 = vpop.f32.mrb[0].mxu0
    %961 = vdwg.mxu0
    %v978 = vunpack.c.l.b16 %v832
    %v979 = vunpack.c.l.b16 %v833
    %v980 = vunpack.c.l.b16 %v834
    %v981 = vunpack.c.l.b16 %v835
    %v982 = vunpack.c.l.b16 %v836
    %v983 = vunpack.c.l.b16 %v837
    %v984 = vunpack.c.l.b16 %v838
    %v985 = vunpack.c.l.b16 %v839
    %v986 = vunpack.c.l.b16 %v840
    %v987 = vunpack.c.l.b16 %v841
    %v988 = vunpack.c.l.b16 %v842
    %v989 = vunpack.c.l.b16 %v843
    %v990 = vunpack.c.l.b16 %v844
    %v991 = vunpack.c.l.b16 %v845
    %v992 = vunpack.c.l.b16 %v846
    %v993 = vunpack.c.l.b16 %v847
    %v994 = vpack.c.b16 %v979, %v978
    %v995 = vpack.c.b16 %v981, %v980
    %v996 = vpack.c.b16 %v983, %v982
    %v997 = vpack.c.b16 %v985, %v984
    %v998 = vpack.c.b16 %v987, %v986
    %v999 = vpack.c.b16 %v989, %v988
    %v1000 = vpack.c.b16 %v991, %v990
    %v1001 = vpack.c.b16 %v993, %v992
    %1010 = vmatprep.subr.bf16.mxu0 0
    %1011 = vmatpush1.bf16.msra.mxu0 %v994
    %1012 = vmatprep.subr.bf16.mxu0 0
    %1013 = vmatpush1.bf16.msra.mxu0 %v995
    %1014 = vmatprep.subr.bf16.mxu0 0
    %1015 = vmatpush1.bf16.msra.mxu0 %v996
    %1016 = vmatprep.subr.bf16.mxu0 0
    %1017 = vmatpush1.bf16.msra.mxu0 %v997
    %1018 = vmatprep.subr.bf16.mxu0 0
    %1019 = vmatpush1.bf16.msra.mxu0 %v998
    %1020 = vmatprep.subr.bf16.mxu0 0
    %1021 = vmatpush1.bf16.msra.mxu0 %v999
    %1022 = vmatprep.subr.bf16.mxu0 0
    %1023 = vmatpush1.bf16.msra.mxu0 %v1000
    %1024 = vmatprep.subr.bf16.mxu0 0
    %1025 = vmatpush1.bf16.msra.mxu0 %v1001
    %1026 = vmatprep.subr.bf16.mxu0 0
    %1027 = vmatpush1.bf16.msra.mxu0 0
    %1028 = vmatprep.subr.bf16.mxu0 0
    %1029 = vmatpush1.bf16.msra.mxu0 0
    %1030 = vmatprep.subr.bf16.mxu0 0
    %1031 = vmatpush1.bf16.msra.mxu0 0
    %1032 = vmatprep.subr.bf16.mxu0 0
    %1033 = vmatpush1.bf16.msra.mxu0 0
    %1034 = vmatprep.subr.bf16.mxu0 0
    %1035 = vmatpush1.bf16.msra.mxu0 0
    %1036 = vmatprep.subr.bf16.mxu0 0
    %1037 = vmatpush1.bf16.msra.mxu0 0
    %1038 = vmatprep.subr.bf16.mxu0 0
    %1039 = vmatpush1.bf16.msra.mxu0 0
    %1040 = vmatprep.subr.bf16.mxu0 0
    %1041 = vmatpush1.bf16.msra.mxu0 0
    %1042 = vmatprep.mubr.bf16.mxu0 0
    %1043 = vmatmul.mubr.bf16.gmra.mrb[0].mxu0 %v820
    %v1044 = vpop.f32.mrb[0].mxu0
    %v1045 = vadd.f32 %v948, %v1044
    %v1046 = vpop.f32.mrb[0].mxu0
    %v1047 = vpop.f32.mrb[0].mxu0
    %v1048 = vadd.f32 %v951, %v1047
    %v1049 = vpop.f32.mrb[0].mxu0
    %1050 = vmatprep.mubr.bf16.mxu0 0
    %1051 = vmatmul.mubr.bf16.gmra.mrb[0].mxu0 %v821
    %v1052 = vpop.f32.mrb[0].mxu0
    %v1053 = vadd.f32 %v956, %v1052
    %v1054 = vpop.f32.mrb[0].mxu0
    %v1055 = vpop.f32.mrb[0].mxu0
    %v1056 = vadd.f32 %v959, %v1055
    %v1057 = vpop.f32.mrb[0].mxu0
    %1058 = vdwg.mxu0
    %s1059 = scalar_lea.vmem [#allocation5], 128
    %v1060 = vld [vmem:[%s1059] sm:$0xf]
    %v1061 = vld [vmem:[%s1059 + $0x4] sm:$0xf]
    %v1062 = vld [vmem:[%s1059 + $0x8] sm:$0xf]
    %v1063 = vld [vmem:[%s1059 + $0xc] sm:$0xf]
    %v1064 = vld [vmem:[%s1059 + $0x10] sm:$0xf]
    %v1065 = vld [vmem:[%s1059 + $0x14] sm:$0xf]
    %v1066 = vld [vmem:[%s1059 + $0x18] sm:$0xf]
    %v1067 = vld [vmem:[%s1059 + $0x1c] sm:$0xf]
    %v1068 = vld [vmem:[%s1059 + $0x20] sm:$0xf]
    %v1069 = vld [vmem:[%s1059 + $0x24] sm:$0xf]
    %v1070 = vld [vmem:[%s1059 + $0x28] sm:$0xf]
    %v1071 = vld [vmem:[%s1059 + $0x2c] sm:$0xf]
    %v1072 = vld [vmem:[%s1059 + $0x30] sm:$0xf]
    %v1073 = vld [vmem:[%s1059 + $0x34] sm:$0xf]
    %v1074 = vld [vmem:[%s1059 + $0x38] sm:$0xf]
    %v1075 = vld [vmem:[%s1059 + $0x3c] sm:$0xf]
    %v1092 = vunpack.c.l.b16 %v1060
    %v1093 = vunpack.c.l.b16 %v1061
    %v1094 = vunpack.c.l.b16 %v1062
    %v1095 = vunpack.c.l.b16 %v1063
    %v1096 = vunpack.c.l.b16 %v1064
    %v1097 = vunpack.c.l.b16 %v1065
    %v1098 = vunpack.c.l.b16 %v1066
    %v1099 = vunpack.c.l.b16 %v1067
    %v1100 = vunpack.c.l.b16 %v1068
    %v1101 = vunpack.c.l.b16 %v1069
    %v1102 = vunpack.c.l.b16 %v1070
    %v1103 = vunpack.c.l.b16 %v1071
    %v1104 = vunpack.c.l.b16 %v1072
    %v1105 = vunpack.c.l.b16 %v1073
    %v1106 = vunpack.c.l.b16 %v1074
    %v1107 = vunpack.c.l.b16 %v1075
    %v1108 = vpack.c.b16 %v1093, %v1092
    %v1109 = vpack.c.b16 %v1095, %v1094
    %v1110 = vpack.c.b16 %v1097, %v1096
    %v1111 = vpack.c.b16 %v1099, %v1098
    %v1112 = vpack.c.b16 %v1101, %v1100
    %v1113 = vpack.c.b16 %v1103, %v1102
    %v1114 = vpack.c.b16 %v1105, %v1104
    %v1115 = vpack.c.b16 %v1107, %v1106
    %1124 = vmatprep.subr.bf16.mxu0 0
    %1125 = vmatpush1.bf16.msra.mxu0 %v1108
    %1126 = vmatprep.subr.bf16.mxu0 0
    %1127 = vmatpush1.bf16.msra.mxu0 %v1109
    %1128 = vmatprep.subr.bf16.mxu0 0
    %1129 = vmatpush1.bf16.msra.mxu0 %v1110
    %1130 = vmatprep.subr.bf16.mxu0 0
    %1131 = vmatpush1.bf16.msra.mxu0 %v1111
    %1132 = vmatprep.subr.bf16.mxu0 0
    %1133 = vmatpush1.bf16.msra.mxu0 %v1112
    %1134 = vmatprep.subr.bf16.mxu0 0
    %1135 = vmatpush1.bf16.msra.mxu0 %v1113
    %1136 = vmatprep.subr.bf16.mxu0 0
    %1137 = vmatpush1.bf16.msra.mxu0 %v1114
    %1138 = vmatprep.subr.bf16.mxu0 0
    %1139 = vmatpush1.bf16.msra.mxu0 %v1115
    %1140 = vmatprep.subr.bf16.mxu0 0
    %1141 = vmatpush1.bf16.msra.mxu0 0
    %1142 = vmatprep.subr.bf16.mxu0 0
    %1143 = vmatpush1.bf16.msra.mxu0 0
    %1144 = vmatprep.subr.bf16.mxu0 0
    %1145 = vmatpush1.bf16.msra.mxu0 0
    %1146 = vmatprep.subr.bf16.mxu0 0
    %1147 = vmatpush1.bf16.msra.mxu0 0
    %1148 = vmatprep.subr.bf16.mxu0 0
    %1149 = vmatpush1.bf16.msra.mxu0 0
    %1150 = vmatprep.subr.bf16.mxu0 0
    %1151 = vmatpush1.bf16.msra.mxu0 0
    %1152 = vmatprep.subr.bf16.mxu0 0
    %1153 = vmatpush1.bf16.msra.mxu0 0
    %1154 = vmatprep.subr.bf16.mxu0 0
    %1155 = vmatpush1.bf16.msra.mxu0 0
    %1156 = vmatprep.mubr.bf16.mxu0 0
    %1157 = vmatmul.mubr.bf16.gmra.mrb[0].mxu0 %v830
    %v1158 = vpop.f32.mrb[0].mxu0
    %v1159 = vadd.f32 0.0, %v1158
    %v1160 = vpop.f32.mrb[0].mxu0
    %v1161 = vpop.f32.mrb[0].mxu0
    %v1162 = vadd.f32 0.0, %v1161
    %v1163 = vpop.f32.mrb[0].mxu0
    %1164 = vmatprep.mubr.bf16.mxu0 0
    %1165 = vmatmul.mubr.bf16.gmra.mrb[0].mxu0 %v831
    %v1166 = vpop.f32.mrb[0].mxu0
    %v1167 = vadd.f32 0.0, %v1166
    %v1168 = vpop.f32.mrb[0].mxu0
    %v1169 = vpop.f32.mrb[0].mxu0
    %v1170 = vadd.f32 0.0, %v1169
    %v1171 = vpop.f32.mrb[0].mxu0
    %1172 = vdwg.mxu0
    %v1173 = vadd.f32 %v1045, %v1159
    %v1174 = vadd.f32 %v1048, %v1162
    %v1175 = vadd.f32 %v1053, %v1167
    %v1176 = vadd.f32 %v1056, %v1170
    %v1177 = vadd.f32 %v1173, %v1174
    %v1178 = vadd.f32 %v1177, %v1175
    %v1179 = vadd.f32 %v1178, %v1176
    %v1180 = vrot.slane %v1179, 4
    %v1181 = vadd.f32 %v1179, %v1180
    %v1182 = vrot.slane %v1181, 2
    %v1183 = vadd.f32 %v1181, %v1182
    %v1184 = vrot.slane %v1183, 1
    %v1185 = vadd.f32 %v1183, %v1184
    %v1186 = vmul.f32 %v1173, %v1173
    %v1187 = vmul.f32 %v1174, %v1174
    %v1188 = vmul.f32 %v1175, %v1175
    %v1189 = vmul.f32 %v1176, %v1176
    %v1190 = vadd.f32 %v1186, %v1187
    %v1191 = vadd.f32 %v1190, %v1188
    %v1192 = vadd.f32 %v1191, %v1189
    %v1193 = vrot.slane %v1192, 4
    %v1194 = vadd.f32 %v1192, %v1193
    %v1195 = vrot.slane %v1194, 2
    %v1196 = vadd.f32 %v1194, %v1195
    %v1197 = vrot.slane %v1196, 1
    %v1198 = vadd.f32 %v1196, %v1197
    %v1199 = vsel %vm597, %v1185, %v1198
    %1200 = vmatprep.subr.mxu0 0.0
    %1201 = vmatpush1.msra.mxu0 %v113
    %1202 = vmatprep.subr.mxu0 0.0
    %1203 = vmatpush1.msra.mxu0 %v114
    %1204 = vmatprep.subr.mxu0 0.0
    %1205 = vmatpush1.msra.mxu0 %v115
    %1206 = vmatprep.subr.mxu0 0.0
    %1207 = vmatpush1.msra.mxu0 %v116
    %1208 = vmatprep.subr.mxu0 0.0
    %1209 = vmatpush1.msra.mxu0 %v117
    %1210 = vmatprep.subr.mxu0 0.0
    %1211 = vmatpush1.msra.mxu0 %v118
    %1212 = vmatprep.subr.mxu0 0.0
    %1213 = vmatpush1.msra.mxu0 %v119
    %1214 = vmatprep.subr.mxu0 0.0
    %1215 = vmatpush1.msra.mxu0 %v120
    %1216 = vmatprep.subr.mxu0 0.0
    %1217 = vmatpush1.msra.mxu0 %v121
    %1218 = vmatprep.subr.mxu0 0.0
    %1219 = vmatpush1.msra.mxu0 %v122
    %1220 = vmatprep.subr.mxu0 0.0
    %1221 = vmatpush1.msra.mxu0 %v123
    %1222 = vmatprep.subr.mxu0 0.0
    %1223 = vmatpush1.msra.mxu0 %v124
    %1224 = vmatprep.subr.mxu0 0.0
    %1225 = vmatpush1.msra.mxu0 %v125
    %1226 = vmatprep.subr.mxu0 0.0
    %1227 = vmatpush1.msra.mxu0 %v126
    %1228 = vmatprep.subr.mxu0 0.0
    %1229 = vmatpush1.msra.mxu0 %v127
    %1230 = vmatprep.subr.mxu0 0.0
    %1231 = vmatpush1.msra.mxu0 %v128
    %1232 = vmatprep.subr.mxu0 0.0
    %1233 = vmatpush1.msra.mxu0 0.0
    %1234 = vmatprep.subr.mxu0 0.0
    %1235 = vmatpush1.msra.mxu0 0.0
    %1236 = vmatprep.subr.mxu0 0.0
    %1237 = vmatpush1.msra.mxu0 0.0
    %1238 = vmatprep.subr.mxu0 0.0
    %1239 = vmatpush1.msra.mxu0 0.0
    %1240 = vmatprep.subr.mxu0 0.0
    %1241 = vmatpush1.msra.mxu0 0.0
    %1242 = vmatprep.subr.mxu0 0.0
    %1243 = vmatpush1.msra.mxu0 0.0
    %1244 = vmatprep.subr.mxu0 0.0
    %1245 = vmatpush1.msra.mxu0 0.0
    %1246 = vmatprep.subr.mxu0 0.0
    %1247 = vmatpush1.msra.mxu0 0.0
    %1248 = vmatprep.subr.mxu0 0.0
    %1249 = vmatpush1.msra.mxu0 0.0
    %1250 = vmatprep.subr.mxu0 0.0
    %1251 = vmatpush1.msra.mxu0 0.0
    %1252 = vmatprep.subr.mxu0 0.0
    %1253 = vmatpush1.msra.mxu0 0.0
    %1254 = vmatprep.subr.mxu0 0.0
    %1255 = vmatpush1.msra.mxu0 0.0
    %1256 = vmatprep.subr.mxu0 0.0
    %1257 = vmatpush1.msra.mxu0 0.0
    %1258 = vmatprep.subr.mxu0 0.0
    %1259 = vmatpush1.msra.mxu0 0.0
    %1260 = vmatprep.subr.mxu0 0.0
    %1261 = vmatpush1.msra.mxu0 0.0
    %1262 = vmatprep.subr.mxu0 0.0
    %1263 = vmatpush1.msra.mxu0 0.0
    %1264 = vmatprep.mubr.f32.mxu0 0.0
    %1265 = vmatmul.mubr.f32.gmra.mrb[0].mxu0 %v1199
    %v1266 = vpop.f32.mrb[0].mxu0
    %v1267 = vadd.f32 0.0, %v1266
    %v1268 = vpop.f32.mrb[0].mxu0
    %1269 = vdwg.mxu0
    %v1270 = vmul.f32 %v1267, 0.001953125
    %v1271 = vmul.f32 %v1270, %v1270
    %v1273 = vrot.slane %v1271, 7
    %v1275 = vsub.f32 %v1270, %v1273
    %v1276 = vld [vmem:[%s9] sm:$0x1]
    %v1277 = vadd.f32 %v1275, 1e-05
    %v1278 = vrsqrt.pop %v1277
    %v1281 = vunpack.c.l.s4 1966171168
    %v1282 = vunpack.c.0.s8 %v1281
    %v1283 = vlaneseq
    %v1284 = vshrl.u32 %v1283, 7
    %v1285 = vsub.s32 %v1282, %v1284
    %v1286 = vrot.slane %v1278, %v1285
    %v1287 = vcombine.high %v1286, %v1286
    %v1289 = vunpack.c.l.s4 1966171168
    %v1290 = vunpack.c.0.s8 %v1289
    %v1291 = vlaneseq
    %v1292 = vshrl.u32 %v1291, 7
    %v1293 = vsub.s32 %v1290, %v1292
    %v1294 = vrot.slane %v1287, %v1293
    %v1296 = vmul.f32 %v1276, %v1294
    %v1297 = vld [vmem:[%s10] sm:$0x1]
    %v1298 = vmul.f32 %v1270, %v1296
    %v1299 = vsub.f32 %v1297, %v1298
    %v1301 = vlaneseq
    %v1302 = vshrl.u32 %v1301, 7
    %v1303 = vsub.s32 0, %v1302
    %v1304 = vrot.slane %v1299, %v1303
    %v1306 = vsel %vm597, %v1296, %v1304
    %v1308 = vsel %vm706, %v1306, 0
    %1310 = vmatprep.subr.mxu0 0.0
    %1311 = vmatpush1.msra.mxu0 %v130
    %1312 = vmatprep.subr.mxu0 0.0
    %1313 = vmatpush1.msra.mxu0 0.0
    %1314 = vmatprep.subr.mxu0 0.0
    %1315 = vmatpush1.msra.mxu0 0.0
    %1316 = vmatprep.subr.mxu0 0.0
    %1317 = vmatpush1.msra.mxu0 0.0
    %1318 = vmatprep.subr.mxu0 0.0
    %1319 = vmatpush1.msra.mxu0 0.0
    %1320 = vmatprep.subr.mxu0 0.0
    %1321 = vmatpush1.msra.mxu0 0.0
    %1322 = vmatprep.subr.mxu0 0.0
    %1323 = vmatpush1.msra.mxu0 0.0
    %1324 = vmatprep.subr.mxu0 0.0
    %1325 = vmatpush1.msra.mxu0 0.0
    %1326 = vmatprep.subr.mxu0 0.0
    %1327 = vmatpush1.msra.mxu0 0.0
    %1328 = vmatprep.subr.mxu0 0.0
    %1329 = vmatpush1.msra.mxu0 0.0
    %1330 = vmatprep.subr.mxu0 0.0
    %1331 = vmatpush1.msra.mxu0 0.0
    %1332 = vmatprep.subr.mxu0 0.0
    %1333 = vmatpush1.msra.mxu0 0.0
    %1334 = vmatprep.subr.mxu0 0.0
    %1335 = vmatpush1.msra.mxu0 0.0
    %1336 = vmatprep.subr.mxu0 0.0
    %1337 = vmatpush1.msra.mxu0 0.0
    %1338 = vmatprep.subr.mxu0 0.0
    %1339 = vmatpush1.msra.mxu0 0.0
    %1340 = vmatprep.subr.mxu0 0.0
    %1341 = vmatpush1.msra.mxu0 0.0
    %1342 = vmatprep.subr.mxu0 0.0
    %1343 = vmatpush1.msra.mxu0 0.0
    %1344 = vmatprep.subr.mxu0 0.0
    %1345 = vmatpush1.msra.mxu0 0.0
    %1346 = vmatprep.subr.mxu0 0.0
    %1347 = vmatpush1.msra.mxu0 0.0
    %1348 = vmatprep.subr.mxu0 0.0
    %1349 = vmatpush1.msra.mxu0 0.0
    %1350 = vmatprep.subr.mxu0 0.0
    %1351 = vmatpush1.msra.mxu0 0.0
    %1352 = vmatprep.subr.mxu0 0.0
    %1353 = vmatpush1.msra.mxu0 0.0
    %1354 = vmatprep.subr.mxu0 0.0
    %1355 = vmatpush1.msra.mxu0 0.0
    %1356 = vmatprep.subr.mxu0 0.0
    %1357 = vmatpush1.msra.mxu0 0.0
    %1358 = vmatprep.subr.mxu0 0.0
    %1359 = vmatpush1.msra.mxu0 0.0
    %1360 = vmatprep.subr.mxu0 0.0
    %1361 = vmatpush1.msra.mxu0 0.0
    %1362 = vmatprep.subr.mxu0 0.0
    %1363 = vmatpush1.msra.mxu0 0.0
    %1364 = vmatprep.subr.mxu0 0.0
    %1365 = vmatpush1.msra.mxu0 0.0
    %1366 = vmatprep.subr.mxu0 0.0
    %1367 = vmatpush1.msra.mxu0 0.0
    %1368 = vmatprep.subr.mxu0 0.0
    %1369 = vmatpush1.msra.mxu0 0.0
    %1370 = vmatprep.subr.mxu0 0.0
    %1371 = vmatpush1.msra.mxu0 0.0
    %1372 = vmatprep.subr.mxu0 0.0
    %1373 = vmatpush1.msra.mxu0 0.0
    %1374 = vmatprep.mubr.f32.mxu0 0.0
    %1375 = vmatmul.mubr.f32.gmra.mrb[0].mxu0 %v1308
    %v1376 = vpop.f32.mrb[0].mxu0
    %v1377 = vadd.f32 0.0, %v1376
    %v1378 = vpop.f32.mrb[0].mxu0
    %1379 = vdwg.mxu0
    %v1380 = vlaneseq
    %v1381 = vshrl.u32 %v1380, 7
    %v1382 = vsub.s32 0, %v1381
    %v1383 = vrot.slane %v1377, %v1382
    %v1384 = vmul.f32 %v1173, %v1383
    %v1385 = vmul.f32 %v1174, %v1383
    %v1386 = vmul.f32 %v1175, %v1383
    %v1387 = vmul.f32 %v1176, %v1383
    %v1388 = vlaneseq
    %v1389 = vshrl.u32 %v1388, 7
    %v1390 = vsub.s32 1, %v1389
    %v1391 = vrot.slane %v1377, %v1390
    %v1392 = vadd.f32 %v1384, %v1391
    %v1393 = vadd.f32 %v1385, %v1391
    %v1394 = vadd.f32 %v1386, %v1391
    %v1395 = vadd.f32 %v1387, %v1391
    %v1396 = vmax.f32 %v1392, 0.0
    %v1397 = vmax.f32 %v1393, 0.0
    %v1398 = vmax.f32 %v1394, 0.0
    %v1399 = vmax.f32 %v1395, 0.0
    %v1400 = vld [vmem:[%s11] sm:$0xf]
    %v1401 = vld [vmem:[%s11 + $0x4] sm:$0xf]
    %v1402 = vld [vmem:[%s11 + $0x8] sm:$0xf]
    %v1403 = vld [vmem:[%s11 + $0xc] sm:$0xf]
    %v1404 = vld [vmem:[%s11 + $0x10] sm:$0xf]
    %v1405 = vld [vmem:[%s11 + $0x14] sm:$0xf]
    %v1406 = vld [vmem:[%s11 + $0x18] sm:$0xf]
    %v1407 = vld [vmem:[%s11 + $0x1c] sm:$0xf]
    %v1408 = vld [vmem:[%s12] sm:$0x1]
    %v1410 = vlaneseq
    %v1411 = vshrl.u32 %v1410, 7
    %v1412 = vsub.s32 0, %v1411
    %v1413 = vrot.slane %v1408, %v1412
    %v1423 = vunpack.c.l.b16 %v1400
    %v1424 = vunpack.c.l.b16 %v1401
    %v1425 = vunpack.c.l.b16 %v1402
    %v1426 = vunpack.c.l.b16 %v1403
    %v1427 = vunpack.c.l.b16 %v1404
    %v1428 = vunpack.c.l.b16 %v1405
    %v1429 = vunpack.c.l.b16 %v1406
    %v1430 = vunpack.c.l.b16 %v1407
    %v1431 = vpack.c.b16 %v1424, %v1423
    %v1432 = vpack.c.b16 %v1426, %v1425
    %v1433 = vpack.c.b16 %v1428, %v1427
    %v1434 = vpack.c.b16 %v1430, %v1429
    %1439 = vmatprep.subr.bf16.mxu0 0
    %1440 = vmatpush1.bf16.msra.mxu0 %v1431
    %1441 = vmatprep.subr.bf16.mxu0 0
    %1442 = vmatpush1.bf16.msra.mxu0 %v1432
    %1443 = vmatprep.subr.bf16.mxu0 0
    %1444 = vmatpush1.bf16.msra.mxu0 %v1433
    %1445 = vmatprep.subr.bf16.mxu0 0
    %1446 = vmatpush1.bf16.msra.mxu0 %v1434
    %1447 = vmatprep.subr.bf16.mxu0 0
    %1448 = vmatpush1.bf16.msra.mxu0 0
    %1449 = vmatprep.subr.bf16.mxu0 0
    %1450 = vmatpush1.bf16.msra.mxu0 0
    %1451 = vmatprep.subr.bf16.mxu0 0
    %1452 = vmatpush1.bf16.msra.mxu0 0
    %1453 = vmatprep.subr.bf16.mxu0 0
    %1454 = vmatpush1.bf16.msra.mxu0 0
    %1455 = vmatprep.subr.bf16.mxu0 0
    %1456 = vmatpush1.bf16.msra.mxu0 0
    %1457 = vmatprep.subr.bf16.mxu0 0
    %1458 = vmatpush1.bf16.msra.mxu0 0
    %1459 = vmatprep.subr.bf16.mxu0 0
    %1460 = vmatpush1.bf16.msra.mxu0 0
    %1461 = vmatprep.subr.bf16.mxu0 0
    %1462 = vmatpush1.bf16.msra.mxu0 0
    %1463 = vmatprep.subr.bf16.mxu0 0
    %1464 = vmatpush1.bf16.msra.mxu0 0
    %1465 = vmatprep.subr.bf16.mxu0 0
    %1466 = vmatpush1.bf16.msra.mxu0 0
    %1467 = vmatprep.subr.bf16.mxu0 0
    %1468 = vmatpush1.bf16.msra.mxu0 0
    %1469 = vmatprep.subr.bf16.mxu0 0
    %1470 = vmatpush1.bf16.msra.mxu0 0
    %1471 = vmatprep.mubr.bf16.mxu0 0
    %1472 = vmatmul.mubr.bf16.gmra.mrb[0].mxu0 %v351
    %v1473 = vpop.f32.mrb[0].mxu0
    %v1474 = vadd.f32 %v1413, %v1473
    %v1475 = vpop.f32.mrb[0].mxu0
    %v1476 = vpop.f32.mrb[0].mxu0
    %v1477 = vadd.f32 %v1413, %v1476
    %v1478 = vpop.f32.mrb[0].mxu0
    %1479 = vmatprep.mubr.bf16.mxu0 0
    %1480 = vmatmul.mubr.bf16.gmra.mrb[0].mxu0 %v353
    %v1481 = vpop.f32.mrb[0].mxu0
    %v1482 = vadd.f32 %v1413, %v1481
    %v1483 = vpop.f32.mrb[0].mxu0
    %v1484 = vpop.f32.mrb[0].mxu0
    %v1485 = vadd.f32 %v1413, %v1484
    %v1486 = vpop.f32.mrb[0].mxu0
    %1487 = vdwg.mxu0
    %v1488 = vadd.f32 %v1474, %v1396
    %v1489 = vadd.f32 %v1477, %v1397
    %v1490 = vadd.f32 %v1482, %v1398
    %v1491 = vadd.f32 %v1485, %v1399
    %1492 = vst [vmem:[#allocation10] sm:$0xff] %v1488
    %1493 = vst [vmem:[#allocation10 + $0x8] sm:$0xff] %v1489
    %1494 = vst [vmem:[#allocation10 + $0x10] sm:$0xff] %v1490
    %1495 = vst [vmem:[#allocation10 + $0x18] sm:$0xff] %v1491
    // Predicated region
    $region70: #{tpu_custom_call.1} parent=1 // pred_check
      _
    $region71: #{tpu_custom_call.1} parent=1 // pred_check_branch
      %1497 = sbr.rel (0) target = $region73
    $region72: #{tpu_custom_call.1} parent=1 // pred_region
      %s1499 = ssub.s32 512, 512
      %1500 = vsyncadd [#allocation4], %s1499
      %s1501 = sshll.u32 [#allocation10], 4
      %s1502 = int_to_ptr.vmem [resolvable:$true] %s1501
      %1507 = dma.vmem_to_hbm [thread:$0]  %s1502, 512, %s13, [#allocation4], 128, 128, 8
    $region73: #{tpu_custom_call.1} parent=1 // pred_fallthru
      _
    // Predicated region
    $region74: #{tpu_custom_call.1} parent=1 // pred_check
      _
    $region75: #{tpu_custom_call.1} parent=1 // pred_check_branch
      %1509 = sbr.rel (0) target = $region77
    $region76: #{tpu_custom_call.1} parent=1 // pred_region
      %1510 = dma.done [#allocation4], 512
    $region77: #{tpu_custom_call.1} parent=1 // pred_fallthru
      _
    %1511 = vsyncpa [#allocation3], 1
    %1512 = vsyncpa [#allocation6], 1
    %1513 = vsyncpa [#allocation9], 1
    %1514 = vsyncpa [#allocation4], 1

</llo_original>
